<compile_context>
chip_gen: v7x
topology: tpu7x:2x2x1
jax: 0.10.0
libtpu: 0.0.40
codegen_flags: <defaults>
</compile_context>

<pallas_src>
import jax
import jax.numpy as jnp
from jax.experimental import pallas as pl
from jax.experimental.pallas import tpu as pltpu

EPS = 1e-5      # PyTorch BatchNorm2d default eps
MARGIN = 128    # lane margin on both sides of the flat buffer (>= Wp+1, lane-aligned)


# ----------------------------- fused Pallas kernel -----------------------------------

def _make_fused_kernel(N, H, W, Cin, Cout, PPpad, with_shortcut):
    Hp, Wp = H + 2, W + 2
    M = MARGIN
    inv_count = 1.0 / float(N * H * W)   # BN normalizer over interior positions only

    def tap_start(kh, kw):
        # lane offset of 3x3 tap (kh, kw) inside the margin-padded flat buffer
        return M + (kh - 1) * Wp + (kw - 1)

    def kernel(x_ref, mask_ref, w1s_ref, w234_ref, gb_ref, o_ref, buf_ref):
        # Hoisted broadcasts (JAX does not CSE broadcast_in_dim).
        mask1 = mask_ref[...]                                   # (1, PPpad) f32
        mask_b = jnp.broadcast_to(mask1, (Cout, PPpad))         # (Cout, PPpad) f32

        def bn_train(acc, j):
            # Single-pass training-mode (biased-variance) batch statistics over
            # the interior (mask==1) positions.  acc: (Cout, PPpad) f32.
            gamma = gb_ref[:, 2 * j:2 * j + 1]                  # (Cout, 1)
            beta = gb_ref[:, 2 * j + 1:2 * j + 2]               # (Cout, 1)
            am = acc * mask_b
            mean = jnp.sum(am, axis=1, keepdims=True) * inv_count
            ex2 = jnp.sum(am * acc, axis=1, keepdims=True) * inv_count
            var = ex2 - mean * mean
            scale = gamma * jax.lax.rsqrt(var + EPS)
            return acc * scale + (beta - mean * scale)

        def patches_from(ref, cast_to_bf16):
            # Nine shifted taps read as static lane-slices of a ref, stacked along
            # the contraction axis (bf16) -> single big-K MXU matmul per layer.
            taps = []
            for kh in range(3):
                for kw in range(3):
                    s = tap_start(kh, kw)
                    t = ref[:, s:s + PPpad]
                    taps.append(t.astype(jnp.bfloat16) if cast_to_bf16 else t)
            return jnp.concatenate(taps, axis=0)                # (9*cin, PPpad) bf16

        # ------------- layer 1 (+ fused 1x1 shortcut rows) -------------
        p1 = patches_from(x_ref, cast_to_bf16=True)             # (9*Cin, PPpad)
        acc = jnp.dot(w1s_ref[...], p1, preferred_element_type=jnp.float32)

        if with_shortcut:
            ident = bn_train(acc[Cout:], 4)      # 1x1 conv acc rows -> shortcut BN
            acc1 = acc[:Cout]
        else:
            ident = x_ref[:, M:M + PPpad]        # identity shortcut (f32, exact)
            acc1 = acc

        y = bn_train(acc1, 0)

        # Inter-layer scratch: zero the margins once, store masked ReLU output
        # (lane-aligned store: M and PPpad are multiples of 128).
        zmargin = jnp.zeros((Cout, M), jnp.bfloat16)
        buf_ref[:, :M] = zmargin
        buf_ref[:, M + PPpad:] = zmargin
        buf_ref[:, M:M + PPpad] = (jnp.maximum(y, 0.0) * mask_b).astype(jnp.bfloat16)

        # ------------- layers 2..4 -------------
        y4 = None
        for l in range(3):
            p = patches_from(buf_ref, cast_to_bf16=False)       # already bf16
            wl = w234_ref[l]                                    # (Cout, 9*Cout) bf16
            acc = jnp.dot(wl, p, preferred_element_type=jnp.float32)
            y = bn_train(acc, l + 1)
            if l < 2:
                buf_ref[:, M:M + PPpad] = (jnp.maximum(y, 0.0) * mask_b).astype(jnp.bfloat16)
            else:
                y4 = y                                          # no ReLU before residual

        # Residual add + final ReLU; (Cout, PPpad) lane-dense store.
        o_ref[...] = jnp.maximum(y4 + ident, 0.0)

    return kernel


# ---------------------------------- forward pass -------------------------------------

def quadruple_conv_forward(x_nchw, p):
    N, Cin, H, W = x_nchw.shape
    Cout = p['w1'].shape[0]
    Hp, Wp = H + 2, W + 2
    PP = N * Hp * Wp
    PPpad = ((PP + 127) // 128) * 128            # lane-dense (multiple of 128)
    M = MARGIN
    assert M >= Wp + 1, "lane margin must cover the max 3x3 tap offset"
    with_shortcut = p['ws'] is not None

    # NCHW -> channel-major flat padded layout with zero lane margins:
    # (Cin, M + PPpad + M), real data at lanes [M, M+PP), zeros elsewhere.
    xt = jnp.pad(jnp.transpose(x_nchw, (1, 0, 2, 3)),
                 ((0, 0), (0, 0), (1, 1), (1, 1)))
    xm = jnp.pad(xt.reshape(Cin, PP), ((0, 0), (M, M + PPpad - PP)))

    # Interior-position mask (0 at the SAME-padding ring and lane-pad tail).
    hh = jnp.arange(Hp)[:, None]
    ww = jnp.arange(Wp)[None, :]
    m2 = ((hh >= 1) & (hh <= H) & (ww >= 1) & (ww <= W)).astype(jnp.float32)
    mask = jnp.pad(jnp.broadcast_to(m2[None], (N, Hp, Wp)).reshape(1, PP),
                   ((0, 0), (0, PPpad - PP)))

    def w3x3(w_oihw):   # OIHW (Co, Ci, 3, 3) -> (Co, 9*Ci), (kh, kw, ci)-major
        co, ci = w_oihw.shape[0], w_oihw.shape[1]
        return jnp.transpose(w_oihw, (0, 2, 3, 1)).reshape(co, 9 * ci)

    # Layer-1 LHS with the 1x1 shortcut fused as extra rows (centre tap columns only).
    w1f = w3x3(p['w1'])
    if with_shortcut:
        ws_rows = jnp.zeros((Cout, 9 * Cin), jnp.float32)
        ws_rows = ws_rows.at[:, 4 * Cin:5 * Cin].set(p['ws'][:, :, 0, 0])
        w1s = jnp.concatenate([w1f, ws_rows], axis=0).astype(jnp.bfloat16)  # (2*Cout, 9*Cin)
    else:
        w1s = w1f.astype(jnp.bfloat16)                                      # (Cout, 9*Cin)

    w234 = jnp.stack([w3x3(p['w2']), w3x3(p['w3']), w3x3(p['w4'])]
                     ).astype(jnp.bfloat16)                                 # (3, Cout, 9*Cout)

    # Packed BN affine params: column 2j = gamma_j, 2j+1 = beta_j; order bn1..4[, bns].
    cols = []
    for i in (1, 2, 3, 4):
        cols += [p[f'g{i}'], p[f'b{i}']]
    if with_shortcut:
        cols += [p['gs'], p['bs']]
    gb = jnp.stack(cols, axis=1).astype(jnp.float32)                        # (Cout, 2*n_bn)

    kernel = _make_fused_kernel(N, H, W, Cin, Cout, PPpad, with_shortcut)
    out = pl.pallas_call(
        kernel,
        out_shape=jax.ShapeDtypeStruct((Cout, PPpad), jnp.float32),
        in_specs=[pl.BlockSpec(memory_space=pltpu.MemorySpace.VMEM)] * 5,
        out_specs=pl.BlockSpec(memory_space=pltpu.MemorySpace.VMEM),
        scratch_shapes=[pltpu.VMEM((Cout, PPpad + 2 * M), jnp.bfloat16)],
        compiler_params=pltpu.CompilerParams(vmem_limit_bytes=32 * 1024 * 1024),
    )(xm, mask, w1s, w234, gb)

    # (Cout, PPpad) -> interior NCHW
    out = out[:, :PP].reshape(Cout, N, Hp, Wp)[:, :, 1:H + 1, 1:W + 1]
    return jnp.transpose(out, (1, 0, 2, 3))


# ---------------- parameter setup (deterministic, PyTorch OIHW layout) ---------------

def init_params(key, cin, cout):
    keys = jax.random.split(key, 15)
    p = {}
    p['w1'] = 0.2 * jax.random.normal(keys[0], (cout, cin, 3, 3), jnp.float32)
    p['w2'] = 0.2 * jax.random.normal(keys[1], (cout, cout, 3, 3), jnp.float32)
    p['w3'] = 0.2 * jax.random.normal(keys[2], (cout, cout, 3, 3), jnp.float32)
    p['w4'] = 0.2 * jax.random.normal(keys[3], (cout, cout, 3, 3), jnp.float32)
    for i in range(4):
        p[f'g{i + 1}'] = 1.0 + 0.1 * jax.random.normal(keys[4 + i], (cout,), jnp.float32)
        p[f'b{i + 1}'] = 0.1 * jax.random.normal(keys[8 + i], (cout,), jnp.float32)
    if cin != cout:
        p['ws'] = 0.2 * jax.random.normal(keys[12], (cout, cin, 1, 1), jnp.float32)
        p['gs'] = 1.0 + 0.1 * jax.random.normal(keys[13], (cout,), jnp.float32)
        p['bs'] = 0.1 * jax.random.normal(keys[14], (cout,), jnp.float32)
    else:
        p['ws'] = None
    return p


# ------------------------------- plain-JAX reference ---------------------------------

def _ref_conv(x, w, pad):
    return jax.lax.conv_general_dilated(
        x, w, (1, 1), [(pad, pad), (pad, pad)],
        dimension_numbers=('NCHW', 'OIHW', 'NCHW'),
        precision=jax.lax.Precision.HIGHEST)


def _ref_bn(x, gamma, beta):
    mean = jnp.mean(x, axis=(0, 2, 3), keepdims=True)
    var = jnp.mean((x - mean) ** 2, axis=(0, 2, 3), keepdims=True)
    return ((x - mean) * jax.lax.rsqrt(var + EPS)
            * gamma.reshape(1, -1, 1, 1) + beta.reshape(1, -1, 1, 1))


def ref_forward(x, p):
    ident = x
    y = jnp.maximum(_ref_bn(_ref_conv(x, p['w1'], 1), p['g1'], p['b1']), 0.0)
    y = jnp.maximum(_ref_bn(_ref_conv(y, p['w2'], 1), p['g2'], p['b2']), 0.0)
    y = jnp.maximum(_ref_bn(_ref_conv(y, p['w3'], 1), p['g3'], p['b3']), 0.0)
    y = _ref_bn(_ref_conv(y, p['w4'], 1), p['g4'], p['b4'])
    if p['ws'] is not None:
        ident = _ref_bn(_ref_conv(x, p['ws'], 0), p['gs'], p['bs'])
    return jnp.maximum(y + ident, 0.0)


# ----------------------------------------- main --------------------------------------

if __name__ == "__main__":
    key = jax.random.PRNGKey(0)
    fwd = jax.jit(quadruple_conv_forward)

    # Tolerance sized for bf16 MXU inputs (f32 accumulation) across the 4-layer
    # conv+BN chain vs a Precision.HIGHEST f32 reference.
    RTOL = ATOL = 3e-2

    # Case 1: in_channels != out_channels -> fused 1x1-conv/BN shortcut path.
    N, Cin, Cout, H, W = 2, 4, 8, 16, 16
    kx1, kp1, kx2, kp2 = jax.random.split(key, 4)
    x1 = jax.random.normal(kx1, (N, Cin, H, W), jnp.float32)
    p1 = init_params(kp1, Cin, Cout)
    out1 = jax.block_until_ready(fwd(x1, p1))
    assert out1.shape == (N, Cout, H, W), out1.shape
    ref1 = jax.block_until_ready(ref_forward(x1, p1))
    assert jnp.allclose(out1, ref1, rtol=RTOL, atol=ATOL), \
        float(jnp.max(jnp.abs(out1 - ref1)))

    # Case 2: in_channels == out_channels -> identity shortcut.
    x2 = jax.random.normal(kx2, (N, Cout, H, W), jnp.float32)
    p2 = init_params(kp2, Cout, Cout)
    out2 = jax.block_until_ready(fwd(x2, p2))
    assert out2.shape == (N, Cout, H, W), out2.shape
    ref2 = jax.block_until_ready(ref_forward(x2, p2))
    assert jnp.allclose(out2, ref2, rtol=RTOL, atol=ATOL), \
        float(jnp.max(jnp.abs(out2 - ref2)))

    print("KERNEL_OK")
</pallas_src>

<mosaic_0001>
module attributes {stable_mosaic.version = 11 : i64} {
  func.func @kernel(%arg0: memref<4x1024xf32, #tpu.memory_space<vmem>>, %arg1: memref<1x768xf32, #tpu.memory_space<vmem>>, %arg2: memref<16x36xbf16, #tpu.memory_space<vmem>>, %arg3: memref<3x8x72xbf16, #tpu.memory_space<vmem>>, %arg4: memref<8x10xf32, #tpu.memory_space<vmem>>, %arg5: memref<8x768xf32, #tpu.memory_space<vmem>>, %arg6: memref<8x1024xbf16, #tpu.memory_space<vmem>>) attributes {dimension_semantics = [], scalar_prefetch = 0 : i64, scratch_operands = 1 : i64, tpu.core_type = #tpu.core_type<tc>} {
    %c0 = arith.constant 0 : index
    %c0_0 = arith.constant 0 : index
    %0 = vector.load %arg1[%c0, %c0_0] : memref<1x768xf32, #tpu.memory_space<vmem>>, vector<1x768xf32>
    %1 = vector.shape_cast %0 : vector<1x768xf32> to vector<1x768xf32>
    %2 = vector.broadcast %1 : vector<1x768xf32> to vector<8x768xf32>
    %c0_1 = arith.constant 0 : index
    %c109 = arith.constant 109 : index
    %3 = vector.load %arg0[%c0_1, %c109] : memref<4x1024xf32, #tpu.memory_space<vmem>>, vector<4x768xf32>
    %4 = arith.truncf %3 : vector<4x768xf32> to vector<4x768xbf16>
    %c0_2 = arith.constant 0 : index
    %c110 = arith.constant 110 : index
    %5 = vector.load %arg0[%c0_2, %c110] : memref<4x1024xf32, #tpu.memory_space<vmem>>, vector<4x768xf32>
    %6 = arith.truncf %5 : vector<4x768xf32> to vector<4x768xbf16>
    %c0_3 = arith.constant 0 : index
    %c111 = arith.constant 111 : index
    %7 = vector.load %arg0[%c0_3, %c111] : memref<4x1024xf32, #tpu.memory_space<vmem>>, vector<4x768xf32>
    %8 = arith.truncf %7 : vector<4x768xf32> to vector<4x768xbf16>
    %c0_4 = arith.constant 0 : index
    %c127 = arith.constant 127 : index
    %9 = vector.load %arg0[%c0_4, %c127] : memref<4x1024xf32, #tpu.memory_space<vmem>>, vector<4x768xf32>
    %10 = arith.truncf %9 : vector<4x768xf32> to vector<4x768xbf16>
    %c0_5 = arith.constant 0 : index
    %c128 = arith.constant 128 : index
    %11 = vector.load %arg0[%c0_5, %c128] : memref<4x1024xf32, #tpu.memory_space<vmem>>, vector<4x768xf32>
    %12 = arith.truncf %11 : vector<4x768xf32> to vector<4x768xbf16>
    %c0_6 = arith.constant 0 : index
    %c129 = arith.constant 129 : index
    %13 = vector.load %arg0[%c0_6, %c129] : memref<4x1024xf32, #tpu.memory_space<vmem>>, vector<4x768xf32>
    %14 = arith.truncf %13 : vector<4x768xf32> to vector<4x768xbf16>
    %c0_7 = arith.constant 0 : index
    %c145 = arith.constant 145 : index
    %15 = vector.load %arg0[%c0_7, %c145] : memref<4x1024xf32, #tpu.memory_space<vmem>>, vector<4x768xf32>
    %16 = arith.truncf %15 : vector<4x768xf32> to vector<4x768xbf16>
    %c0_8 = arith.constant 0 : index
    %c146 = arith.constant 146 : index
    %17 = vector.load %arg0[%c0_8, %c146] : memref<4x1024xf32, #tpu.memory_space<vmem>>, vector<4x768xf32>
    %18 = arith.truncf %17 : vector<4x768xf32> to vector<4x768xbf16>
    %c0_9 = arith.constant 0 : index
    %c147 = arith.constant 147 : index
    %19 = vector.load %arg0[%c0_9, %c147] : memref<4x1024xf32, #tpu.memory_space<vmem>>, vector<4x768xf32>
    %20 = arith.truncf %19 : vector<4x768xf32> to vector<4x768xbf16>
    %21 = tpu.concatenate %4, %6, %8, %10, %12, %14, %16, %18, %20 in 0 : vector<4x768xbf16>, vector<4x768xbf16>, vector<4x768xbf16>, vector<4x768xbf16>, vector<4x768xbf16>, vector<4x768xbf16>, vector<4x768xbf16>, vector<4x768xbf16>, vector<4x768xbf16> -> vector<36x768xbf16>
    %c0_10 = arith.constant 0 : index
    %c0_11 = arith.constant 0 : index
    %22 = vector.load %arg2[%c0_10, %c0_11] : memref<16x36xbf16, #tpu.memory_space<vmem>>, vector<16x36xbf16>
    %cst = arith.constant dense<0.000000e+00> : vector<16x768xf32>
    %23 = tpu.matmul %22, %21, %cst {dimension_numbers = #tpu.dot_dimension_numbers<[1], [0], [0], [1], [0, 0, 1, 1], [], []>} : vector<16x36xbf16>, vector<36x768xbf16>, vector<16x768xf32> -> vector<16x768xf32>
    %24 = vector.extract_strided_slice %23 {offsets = [8, 0], sizes = [8, 768], strides = [1, 1]} : vector<16x768xf32> to vector<8x768xf32>
    %c0_12 = arith.constant 0 : index
    %c8 = arith.constant 8 : index
    %25 = vector.load %arg4[%c0_12, %c8] : memref<8x10xf32, #tpu.memory_space<vmem>>, vector<8x1xf32>
    %c0_13 = arith.constant 0 : index
    %c9 = arith.constant 9 : index
    %26 = vector.load %arg4[%c0_13, %c9] : memref<8x10xf32, #tpu.memory_space<vmem>>, vector<8x1xf32>
    %27 = arith.mulf %24, %2 : vector<8x768xf32>
    %cst_14 = arith.constant dense<0.000000e+00> : vector<8xf32>
    %28 = vector.multi_reduction <add>, %27, %cst_14 [1] : vector<8x768xf32> to vector<8xf32>
    %29 = vector.shape_cast %28 : vector<8xf32> to vector<8x1xf32>
    %cst_15 = arith.constant 0.001953125 : f32
    %30 = vector.broadcast %cst_15 : f32 to vector<8x1xf32>
    %31 = arith.mulf %29, %30 : vector<8x1xf32>
    %32 = arith.mulf %27, %24 : vector<8x768xf32>
    %cst_16 = arith.constant dense<0.000000e+00> : vector<8xf32>
    %33 = vector.multi_reduction <add>, %32, %cst_16 [1] : vector<8x768xf32> to vector<8xf32>
    %34 = vector.shape_cast %33 : vector<8xf32> to vector<8x1xf32>
    %cst_17 = arith.constant 0.001953125 : f32
    %35 = vector.broadcast %cst_17 : f32 to vector<8x1xf32>
    %36 = arith.mulf %34, %35 : vector<8x1xf32>
    %37 = arith.mulf %31, %31 : vector<8x1xf32>
    %38 = arith.subf %36, %37 : vector<8x1xf32>
    %cst_18 = arith.constant 9.99999974E-6 : f32
    %39 = vector.broadcast %cst_18 : f32 to vector<8x1xf32>
    %40 = arith.addf %38, %39 : vector<8x1xf32>
    %41 = math.rsqrt %40 : vector<8x1xf32>
    %42 = arith.mulf %25, %41 : vector<8x1xf32>
    %43 = vector.broadcast %42 : vector<8x1xf32> to vector<8x768xf32>
    %44 = arith.mulf %24, %43 : vector<8x768xf32>
    %45 = arith.mulf %31, %42 : vector<8x1xf32>
    %46 = arith.subf %26, %45 : vector<8x1xf32>
    %47 = vector.broadcast %46 : vector<8x1xf32> to vector<8x768xf32>
    %48 = arith.addf %44, %47 : vector<8x768xf32>
    %49 = vector.extract_strided_slice %23 {offsets = [0, 0], sizes = [8, 768], strides = [1, 1]} : vector<16x768xf32> to vector<8x768xf32>
    %c0_19 = arith.constant 0 : index
    %c0_20 = arith.constant 0 : index
    %50 = vector.load %arg4[%c0_19, %c0_20] : memref<8x10xf32, #tpu.memory_space<vmem>>, vector<8x1xf32>
    %c0_21 = arith.constant 0 : index
    %c1 = arith.constant 1 : index
    %51 = vector.load %arg4[%c0_21, %c1] : memref<8x10xf32, #tpu.memory_space<vmem>>, vector<8x1xf32>
    %52 = arith.mulf %49, %2 : vector<8x768xf32>
    %cst_22 = arith.constant dense<0.000000e+00> : vector<8xf32>
    %53 = vector.multi_reduction <add>, %52, %cst_22 [1] : vector<8x768xf32> to vector<8xf32>
    %54 = vector.shape_cast %53 : vector<8xf32> to vector<8x1xf32>
    %cst_23 = arith.constant 0.001953125 : f32
    %55 = vector.broadcast %cst_23 : f32 to vector<8x1xf32>
    %56 = arith.mulf %54, %55 : vector<8x1xf32>
    %57 = arith.mulf %52, %49 : vector<8x768xf32>
    %cst_24 = arith.constant dense<0.000000e+00> : vector<8xf32>
    %58 = vector.multi_reduction <add>, %57, %cst_24 [1] : vector<8x768xf32> to vector<8xf32>
    %59 = vector.shape_cast %58 : vector<8xf32> to vector<8x1xf32>
    %cst_25 = arith.constant 0.001953125 : f32
    %60 = vector.broadcast %cst_25 : f32 to vector<8x1xf32>
    %61 = arith.mulf %59, %60 : vector<8x1xf32>
    %62 = arith.mulf %56, %56 : vector<8x1xf32>
    %63 = arith.subf %61, %62 : vector<8x1xf32>
    %cst_26 = arith.constant 9.99999974E-6 : f32
    %64 = vector.broadcast %cst_26 : f32 to vector<8x1xf32>
    %65 = arith.addf %63, %64 : vector<8x1xf32>
    %66 = math.rsqrt %65 : vector<8x1xf32>
    %67 = arith.mulf %50, %66 : vector<8x1xf32>
    %68 = vector.broadcast %67 : vector<8x1xf32> to vector<8x768xf32>
    %69 = arith.mulf %49, %68 : vector<8x768xf32>
    %70 = arith.mulf %56, %67 : vector<8x1xf32>
    %71 = arith.subf %51, %70 : vector<8x1xf32>
    %72 = vector.broadcast %71 : vector<8x1xf32> to vector<8x768xf32>
    %73 = arith.addf %69, %72 : vector<8x768xf32>
    %cst_27 = arith.constant 0.000000e+00 : bf16
    %74 = vector.broadcast %cst_27 : bf16 to vector<8x128xbf16>
    %c0_28 = arith.constant 0 : index
    %c0_29 = arith.constant 0 : index
    %75 = vector.load %arg6[%c0_28, %c0_29] : memref<8x1024xbf16, #tpu.memory_space<vmem>>, vector<8x128xbf16>
    tpu.vector_store %arg6[%c0_28, %c0_29], %74 {strides = array<i32>} : memref<8x1024xbf16, #tpu.memory_space<vmem>>, vector<8x128xbf16>,
    %c0_30 = arith.constant 0 : index
    %c896 = arith.constant 896 : index
    %76 = vector.load %arg6[%c0_30, %c896] : memref<8x1024xbf16, #tpu.memory_space<vmem>>, vector<8x128xbf16>
    tpu.vector_store %arg6[%c0_30, %c896], %74 {strides = array<i32>} : memref<8x1024xbf16, #tpu.memory_space<vmem>>, vector<8x128xbf16>,
    %cst_31 = arith.constant 0.000000e+00 : f32
    %77 = vector.broadcast %cst_31 : f32 to vector<8x768xf32>
    %78 = arith.maximumf %73, %77 : vector<8x768xf32>
    %79 = arith.mulf %78, %2 : vector<8x768xf32>
    %80 = arith.truncf %79 : vector<8x768xf32> to vector<8x768xbf16>
    %c0_32 = arith.constant 0 : index
    %c128_33 = arith.constant 128 : index
    %81 = vector.load %arg6[%c0_32, %c128_33] : memref<8x1024xbf16, #tpu.memory_space<vmem>>, vector<8x768xbf16>
    tpu.vector_store %arg6[%c0_32, %c128_33], %80 {strides = array<i32>} : memref<8x1024xbf16, #tpu.memory_space<vmem>>, vector<8x768xbf16>,
    %c0_34 = arith.constant 0 : index
    %c109_35 = arith.constant 109 : index
    %82 = vector.load %arg6[%c0_34, %c109_35] : memref<8x1024xbf16, #tpu.memory_space<vmem>>, vector<8x768xbf16>
    %c0_36 = arith.constant 0 : index
    %c110_37 = arith.constant 110 : index
    %83 = vector.load %arg6[%c0_36, %c110_37] : memref<8x1024xbf16, #tpu.memory_space<vmem>>, vector<8x768xbf16>
    %c0_38 = arith.constant 0 : index
    %c111_39 = arith.constant 111 : index
    %84 = vector.load %arg6[%c0_38, %c111_39] : memref<8x1024xbf16, #tpu.memory_space<vmem>>, vector<8x768xbf16>
    %c0_40 = arith.constant 0 : index
    %c127_41 = arith.constant 127 : index
    %85 = vector.load %arg6[%c0_40, %c127_41] : memref<8x1024xbf16, #tpu.memory_space<vmem>>, vector<8x768xbf16>
    %c0_42 = arith.constant 0 : index
    %c128_43 = arith.constant 128 : index
    %86 = vector.load %arg6[%c0_42, %c128_43] : memref<8x1024xbf16, #tpu.memory_space<vmem>>, vector<8x768xbf16>
    %c0_44 = arith.constant 0 : index
    %c129_45 = arith.constant 129 : index
    %87 = vector.load %arg6[%c0_44, %c129_45] : memref<8x1024xbf16, #tpu.memory_space<vmem>>, vector<8x768xbf16>
    %c0_46 = arith.constant 0 : index
    %c145_47 = arith.constant 145 : index
    %88 = vector.load %arg6[%c0_46, %c145_47] : memref<8x1024xbf16, #tpu.memory_space<vmem>>, vector<8x768xbf16>
    %c0_48 = arith.constant 0 : index
    %c146_49 = arith.constant 146 : index
    %89 = vector.load %arg6[%c0_48, %c146_49] : memref<8x1024xbf16, #tpu.memory_space<vmem>>, vector<8x768xbf16>
    %c0_50 = arith.constant 0 : index
    %c147_51 = arith.constant 147 : index
    %90 = vector.load %arg6[%c0_50, %c147_51] : memref<8x1024xbf16, #tpu.memory_space<vmem>>, vector<8x768xbf16>
    %91 = tpu.concatenate %82, %83, %84, %85, %86, %87, %88, %89, %90 in 0 : vector<8x768xbf16>, vector<8x768xbf16>, vector<8x768xbf16>, vector<8x768xbf16>, vector<8x768xbf16>, vector<8x768xbf16>, vector<8x768xbf16>, vector<8x768xbf16>, vector<8x768xbf16> -> vector<72x768xbf16>
    %c0_52 = arith.constant 0 : index
    %c0_53 = arith.constant 0 : index
    %c0_54 = arith.constant 0 : index
    %92 = vector.load %arg3[%c0_52, %c0_53, %c0_54] : memref<3x8x72xbf16, #tpu.memory_space<vmem>>, vector<1x8x72xbf16>
    %93 = vector.shape_cast %92 : vector<1x8x72xbf16> to vector<8x72xbf16>
    %cst_55 = arith.constant dense<0.000000e+00> : vector<8x768xf32>
    %94 = tpu.matmul %93, %91, %cst_55 {dimension_numbers = #tpu.dot_dimension_numbers<[1], [0], [0], [1], [0, 0, 1, 1], [], []>} : vector<8x72xbf16>, vector<72x768xbf16>, vector<8x768xf32> -> vector<8x768xf32>
    %c0_56 = arith.constant 0 : index
    %c2 = arith.constant 2 : index
    %95 = vector.load %arg4[%c0_56, %c2] : memref<8x10xf32, #tpu.memory_space<vmem>>, vector<8x1xf32>
    %c0_57 = arith.constant 0 : index
    %c3 = arith.constant 3 : index
    %96 = vector.load %arg4[%c0_57, %c3] : memref<8x10xf32, #tpu.memory_space<vmem>>, vector<8x1xf32>
    %97 = arith.mulf %94, %2 : vector<8x768xf32>
    %cst_58 = arith.constant dense<0.000000e+00> : vector<8xf32>
    %98 = vector.multi_reduction <add>, %97, %cst_58 [1] : vector<8x768xf32> to vector<8xf32>
    %99 = vector.shape_cast %98 : vector<8xf32> to vector<8x1xf32>
    %cst_59 = arith.constant 0.001953125 : f32
    %100 = vector.broadcast %cst_59 : f32 to vector<8x1xf32>
    %101 = arith.mulf %99, %100 : vector<8x1xf32>
    %102 = arith.mulf %97, %94 : vector<8x768xf32>
    %cst_60 = arith.constant dense<0.000000e+00> : vector<8xf32>
    %103 = vector.multi_reduction <add>, %102, %cst_60 [1] : vector<8x768xf32> to vector<8xf32>
    %104 = vector.shape_cast %103 : vector<8xf32> to vector<8x1xf32>
    %cst_61 = arith.constant 0.001953125 : f32
    %105 = vector.broadcast %cst_61 : f32 to vector<8x1xf32>
    %106 = arith.mulf %104, %105 : vector<8x1xf32>
    %107 = arith.mulf %101, %101 : vector<8x1xf32>
    %108 = arith.subf %106, %107 : vector<8x1xf32>
    %cst_62 = arith.constant 9.99999974E-6 : f32
    %109 = vector.broadcast %cst_62 : f32 to vector<8x1xf32>
    %110 = arith.addf %108, %109 : vector<8x1xf32>
    %111 = math.rsqrt %110 : vector<8x1xf32>
    %112 = arith.mulf %95, %111 : vector<8x1xf32>
    %113 = vector.broadcast %112 : vector<8x1xf32> to vector<8x768xf32>
    %114 = arith.mulf %94, %113 : vector<8x768xf32>
    %115 = arith.mulf %101, %112 : vector<8x1xf32>
    %116 = arith.subf %96, %115 : vector<8x1xf32>
    %117 = vector.broadcast %116 : vector<8x1xf32> to vector<8x768xf32>
    %118 = arith.addf %114, %117 : vector<8x768xf32>
    %cst_63 = arith.constant 0.000000e+00 : f32
    %119 = vector.broadcast %cst_63 : f32 to vector<8x768xf32>
    %120 = arith.maximumf %118, %119 : vector<8x768xf32>
    %121 = arith.mulf %120, %2 : vector<8x768xf32>
    %122 = arith.truncf %121 : vector<8x768xf32> to vector<8x768xbf16>
    %c0_64 = arith.constant 0 : index
    %c128_65 = arith.constant 128 : index
    %123 = vector.load %arg6[%c0_64, %c128_65] : memref<8x1024xbf16, #tpu.memory_space<vmem>>, vector<8x768xbf16>
    tpu.vector_store %arg6[%c0_64, %c128_65], %122 {strides = array<i32>} : memref<8x1024xbf16, #tpu.memory_space<vmem>>, vector<8x768xbf16>,
    %c0_66 = arith.constant 0 : index
    %c109_67 = arith.constant 109 : index
    %124 = vector.load %arg6[%c0_66, %c109_67] : memref<8x1024xbf16, #tpu.memory_space<vmem>>, vector<8x768xbf16>
    %c0_68 = arith.constant 0 : index
    %c110_69 = arith.constant 110 : index
    %125 = vector.load %arg6[%c0_68, %c110_69] : memref<8x1024xbf16, #tpu.memory_space<vmem>>, vector<8x768xbf16>
    %c0_70 = arith.constant 0 : index
    %c111_71 = arith.constant 111 : index
    %126 = vector.load %arg6[%c0_70, %c111_71] : memref<8x1024xbf16, #tpu.memory_space<vmem>>, vector<8x768xbf16>
    %c0_72 = arith.constant 0 : index
    %c127_73 = arith.constant 127 : index
    %127 = vector.load %arg6[%c0_72, %c127_73] : memref<8x1024xbf16, #tpu.memory_space<vmem>>, vector<8x768xbf16>
    %c0_74 = arith.constant 0 : index
    %c128_75 = arith.constant 128 : index
    %128 = vector.load %arg6[%c0_74, %c128_75] : memref<8x1024xbf16, #tpu.memory_space<vmem>>, vector<8x768xbf16>
    %c0_76 = arith.constant 0 : index
    %c129_77 = arith.constant 129 : index
    %129 = vector.load %arg6[%c0_76, %c129_77] : memref<8x1024xbf16, #tpu.memory_space<vmem>>, vector<8x768xbf16>
    %c0_78 = arith.constant 0 : index
    %c145_79 = arith.constant 145 : index
    %130 = vector.load %arg6[%c0_78, %c145_79] : memref<8x1024xbf16, #tpu.memory_space<vmem>>, vector<8x768xbf16>
    %c0_80 = arith.constant 0 : index
    %c146_81 = arith.constant 146 : index
    %131 = vector.load %arg6[%c0_80, %c146_81] : memref<8x1024xbf16, #tpu.memory_space<vmem>>, vector<8x768xbf16>
    %c0_82 = arith.constant 0 : index
    %c147_83 = arith.constant 147 : index
    %132 = vector.load %arg6[%c0_82, %c147_83] : memref<8x1024xbf16, #tpu.memory_space<vmem>>, vector<8x768xbf16>
    %133 = tpu.concatenate %124, %125, %126, %127, %128, %129, %130, %131, %132 in 0 : vector<8x768xbf16>, vector<8x768xbf16>, vector<8x768xbf16>, vector<8x768xbf16>, vector<8x768xbf16>, vector<8x768xbf16>, vector<8x768xbf16>, vector<8x768xbf16>, vector<8x768xbf16> -> vector<72x768xbf16>
    %c1_84 = arith.constant 1 : index
    %c0_85 = arith.constant 0 : index
    %c0_86 = arith.constant 0 : index
    %134 = vector.load %arg3[%c1_84, %c0_85, %c0_86] : memref<3x8x72xbf16, #tpu.memory_space<vmem>>, vector<1x8x72xbf16>
    %135 = vector.shape_cast %134 : vector<1x8x72xbf16> to vector<8x72xbf16>
    %cst_87 = arith.constant dense<0.000000e+00> : vector<8x768xf32>
    %136 = tpu.matmul %135, %133, %cst_87 {dimension_numbers = #tpu.dot_dimension_numbers<[1], [0], [0], [1], [0, 0, 1, 1], [], []>} : vector<8x72xbf16>, vector<72x768xbf16>, vector<8x768xf32> -> vector<8x768xf32>
    %c0_88 = arith.constant 0 : index
    %c4 = arith.constant 4 : index
    %137 = vector.load %arg4[%c0_88, %c4] : memref<8x10xf32, #tpu.memory_space<vmem>>, vector<8x1xf32>
    %c0_89 = arith.constant 0 : index
    %c5 = arith.constant 5 : index
    %138 = vector.load %arg4[%c0_89, %c5] : memref<8x10xf32, #tpu.memory_space<vmem>>, vector<8x1xf32>
    %139 = arith.mulf %136, %2 : vector<8x768xf32>
    %cst_90 = arith.constant dense<0.000000e+00> : vector<8xf32>
    %140 = vector.multi_reduction <add>, %139, %cst_90 [1] : vector<8x768xf32> to vector<8xf32>
    %141 = vector.shape_cast %140 : vector<8xf32> to vector<8x1xf32>
    %cst_91 = arith.constant 0.001953125 : f32
    %142 = vector.broadcast %cst_91 : f32 to vector<8x1xf32>
    %143 = arith.mulf %141, %142 : vector<8x1xf32>
    %144 = arith.mulf %139, %136 : vector<8x768xf32>
    %cst_92 = arith.constant dense<0.000000e+00> : vector<8xf32>
    %145 = vector.multi_reduction <add>, %144, %cst_92 [1] : vector<8x768xf32> to vector<8xf32>
    %146 = vector.shape_cast %145 : vector<8xf32> to vector<8x1xf32>
    %cst_93 = arith.constant 0.001953125 : f32
    %147 = vector.broadcast %cst_93 : f32 to vector<8x1xf32>
    %148 = arith.mulf %146, %147 : vector<8x1xf32>
    %149 = arith.mulf %143, %143 : vector<8x1xf32>
    %150 = arith.subf %148, %149 : vector<8x1xf32>
    %cst_94 = arith.constant 9.99999974E-6 : f32
    %151 = vector.broadcast %cst_94 : f32 to vector<8x1xf32>
    %152 = arith.addf %150, %151 : vector<8x1xf32>
    %153 = math.rsqrt %152 : vector<8x1xf32>
    %154 = arith.mulf %137, %153 : vector<8x1xf32>
    %155 = vector.broadcast %154 : vector<8x1xf32> to vector<8x768xf32>
    %156 = arith.mulf %136, %155 : vector<8x768xf32>
    %157 = arith.mulf %143, %154 : vector<8x1xf32>
    %158 = arith.subf %138, %157 : vector<8x1xf32>
    %159 = vector.broadcast %158 : vector<8x1xf32> to vector<8x768xf32>
    %160 = arith.addf %156, %159 : vector<8x768xf32>
    %cst_95 = arith.constant 0.000000e+00 : f32
    %161 = vector.broadcast %cst_95 : f32 to vector<8x768xf32>
    %162 = arith.maximumf %160, %161 : vector<8x768xf32>
    %163 = arith.mulf %162, %2 : vector<8x768xf32>
    %164 = arith.truncf %163 : vector<8x768xf32> to vector<8x768xbf16>
    %c0_96 = arith.constant 0 : index
    %c128_97 = arith.constant 128 : index
    %165 = vector.load %arg6[%c0_96, %c128_97] : memref<8x1024xbf16, #tpu.memory_space<vmem>>, vector<8x768xbf16>
    tpu.vector_store %arg6[%c0_96, %c128_97], %164 {strides = array<i32>} : memref<8x1024xbf16, #tpu.memory_space<vmem>>, vector<8x768xbf16>,
    %c0_98 = arith.constant 0 : index
    %c109_99 = arith.constant 109 : index
    %166 = vector.load %arg6[%c0_98, %c109_99] : memref<8x1024xbf16, #tpu.memory_space<vmem>>, vector<8x768xbf16>
    %c0_100 = arith.constant 0 : index
    %c110_101 = arith.constant 110 : index
    %167 = vector.load %arg6[%c0_100, %c110_101] : memref<8x1024xbf16, #tpu.memory_space<vmem>>, vector<8x768xbf16>
    %c0_102 = arith.constant 0 : index
    %c111_103 = arith.constant 111 : index
    %168 = vector.load %arg6[%c0_102, %c111_103] : memref<8x1024xbf16, #tpu.memory_space<vmem>>, vector<8x768xbf16>
    %c0_104 = arith.constant 0 : index
    %c127_105 = arith.constant 127 : index
    %169 = vector.load %arg6[%c0_104, %c127_105] : memref<8x1024xbf16, #tpu.memory_space<vmem>>, vector<8x768xbf16>
    %c0_106 = arith.constant 0 : index
    %c128_107 = arith.constant 128 : index
    %170 = vector.load %arg6[%c0_106, %c128_107] : memref<8x1024xbf16, #tpu.memory_space<vmem>>, vector<8x768xbf16>
    %c0_108 = arith.constant 0 : index
    %c129_109 = arith.constant 129 : index
    %171 = vector.load %arg6[%c0_108, %c129_109] : memref<8x1024xbf16, #tpu.memory_space<vmem>>, vector<8x768xbf16>
    %c0_110 = arith.constant 0 : index
    %c145_111 = arith.constant 145 : index
    %172 = vector.load %arg6[%c0_110, %c145_111] : memref<8x1024xbf16, #tpu.memory_space<vmem>>, vector<8x768xbf16>
    %c0_112 = arith.constant 0 : index
    %c146_113 = arith.constant 146 : index
    %173 = vector.load %arg6[%c0_112, %c146_113] : memref<8x1024xbf16, #tpu.memory_space<vmem>>, vector<8x768xbf16>
    %c0_114 = arith.constant 0 : index
    %c147_115 = arith.constant 147 : index
    %174 = vector.load %arg6[%c0_114, %c147_115] : memref<8x1024xbf16, #tpu.memory_space<vmem>>, vector<8x768xbf16>
    %175 = tpu.concatenate %166, %167, %168, %169, %170, %171, %172, %173, %174 in 0 : vector<8x768xbf16>, vector<8x768xbf16>, vector<8x768xbf16>, vector<8x768xbf16>, vector<8x768xbf16>, vector<8x768xbf16>, vector<8x768xbf16>, vector<8x768xbf16>, vector<8x768xbf16> -> vector<72x768xbf16>
    %c2_116 = arith.constant 2 : index
    %c0_117 = arith.constant 0 : index
    %c0_118 = arith.constant 0 : index
    %176 = vector.load %arg3[%c2_116, %c0_117, %c0_118] : memref<3x8x72xbf16, #tpu.memory_space<vmem>>, vector<1x8x72xbf16>
    %177 = vector.shape_cast %176 : vector<1x8x72xbf16> to vector<8x72xbf16>
    %cst_119 = arith.constant dense<0.000000e+00> : vector<8x768xf32>
    %178 = tpu.matmul %177, %175, %cst_119 {dimension_numbers = #tpu.dot_dimension_numbers<[1], [0], [0], [1], [0, 0, 1, 1], [], []>} : vector<8x72xbf16>, vector<72x768xbf16>, vector<8x768xf32> -> vector<8x768xf32>
    %c0_120 = arith.constant 0 : index
    %c6 = arith.constant 6 : index
    %179 = vector.load %arg4[%c0_120, %c6] : memref<8x10xf32, #tpu.memory_space<vmem>>, vector<8x1xf32>
    %c0_121 = arith.constant 0 : index
    %c7 = arith.constant 7 : index
    %180 = vector.load %arg4[%c0_121, %c7] : memref<8x10xf32, #tpu.memory_space<vmem>>, vector<8x1xf32>
    %181 = arith.mulf %178, %2 : vector<8x768xf32>
    %cst_122 = arith.constant dense<0.000000e+00> : vector<8xf32>
    %182 = vector.multi_reduction <add>, %181, %cst_122 [1] : vector<8x768xf32> to vector<8xf32>
    %183 = vector.shape_cast %182 : vector<8xf32> to vector<8x1xf32>
    %cst_123 = arith.constant 0.001953125 : f32
    %184 = vector.broadcast %cst_123 : f32 to vector<8x1xf32>
    %185 = arith.mulf %183, %184 : vector<8x1xf32>
    %186 = arith.mulf %181, %178 : vector<8x768xf32>
    %cst_124 = arith.constant dense<0.000000e+00> : vector<8xf32>
    %187 = vector.multi_reduction <add>, %186, %cst_124 [1] : vector<8x768xf32> to vector<8xf32>
    %188 = vector.shape_cast %187 : vector<8xf32> to vector<8x1xf32>
    %cst_125 = arith.constant 0.001953125 : f32
    %189 = vector.broadcast %cst_125 : f32 to vector<8x1xf32>
    %190 = arith.mulf %188, %189 : vector<8x1xf32>
    %191 = arith.mulf %185, %185 : vector<8x1xf32>
    %192 = arith.subf %190, %191 : vector<8x1xf32>
    %cst_126 = arith.constant 9.99999974E-6 : f32
    %193 = vector.broadcast %cst_126 : f32 to vector<8x1xf32>
    %194 = arith.addf %192, %193 : vector<8x1xf32>
    %195 = math.rsqrt %194 : vector<8x1xf32>
    %196 = arith.mulf %179, %195 : vector<8x1xf32>
    %197 = vector.broadcast %196 : vector<8x1xf32> to vector<8x768xf32>
    %198 = arith.mulf %178, %197 : vector<8x768xf32>
    %199 = arith.mulf %185, %196 : vector<8x1xf32>
    %200 = arith.subf %180, %199 : vector<8x1xf32>
    %201 = vector.broadcast %200 : vector<8x1xf32> to vector<8x768xf32>
    %202 = arith.addf %198, %201 : vector<8x768xf32>
    %203 = arith.addf %202, %48 : vector<8x768xf32>
    %cst_127 = arith.constant 0.000000e+00 : f32
    %204 = vector.broadcast %cst_127 : f32 to vector<8x768xf32>
    %205 = arith.maximumf %203, %204 : vector<8x768xf32>
    %c0_128 = arith.constant 0 : index
    %c0_129 = arith.constant 0 : index
    %206 = vector.load %arg5[%c0_128, %c0_129] : memref<8x768xf32, #tpu.memory_space<vmem>>, vector<8x768xf32>
    tpu.vector_store %arg5[%c0_128, %c0_129], %205 {strides = array<i32>} : memref<8x768xf32, #tpu.memory_space<vmem>>, vector<8x768xf32>,
    return
  }
}

</mosaic_0001>

<llo_original>
// kernel: quadruple_conv_forward.1
$region0: #{quadruple_conv_forward.1}
  #allocation0 [shape = 'u32[]', space=smem, size = 0x4, offset = 0x4, fixed_abs, tag = 'smem constant byte address 0x4 - core index']
  #allocation1 [shape = 'u32[144,128]{1,0:T(1,128)}', space=vmem, size = 0x12000, scoped, tag = 'internal scratch']
  #allocation2 [shape = 'bf16[8,1024]{1,0:T(8,128)(2,1)}', space=vmem, size = 0x4000, scoped, tag = 'scratch operand']
  %s0 = inlined_call_operand.vmem [shape: f32[4,1024], index: 0, kind: input, shape index: {}]
  %s1 = inlined_call_operand.vmem [shape: f32[1,768], index: 1, kind: input, shape index: {}]
  %s2 = inlined_call_operand.vmem [shape: bf16[16,36], index: 2, kind: input, shape index: {}]
  %s3 = inlined_call_operand.vmem [shape: bf16[3,8,72], index: 3, kind: input, shape index: {}]
  %s4 = inlined_call_operand.vmem [shape: f32[8,10], index: 4, kind: input, shape index: {}]
  %s5 = inlined_call_operand.vmem [shape: f32[8,768], index: 5, kind: output, shape index: {}]
  %s6 = sld [smem:[#allocation0]]
  $region30: #{quadruple_conv_forward.1} parent=0
    _
  %s8 = ssub.s32 1, %s6
  %s9 = scalar_select 0, %s8, %s6
  // Predicated region
  $region2: #{quadruple_conv_forward.1} parent=0 // pred_check
    _
  $region3: #{quadruple_conv_forward.1} parent=0 // pred_check_branch
    %11 = sbr.rel (0) target = $region5
  $region4: #{quadruple_conv_forward.1} parent=0 // pred_region
    _
  $region5: #{quadruple_conv_forward.1} parent=0 // pred_fallthru
    _
  // Predicated region
  $region6: #{quadruple_conv_forward.1} parent=0 // pred_check
    _
  $region7: #{quadruple_conv_forward.1} parent=0 // pred_check_branch
    %13 = sbr.rel (0) target = $region9
  $region8: #{quadruple_conv_forward.1} parent=0 // pred_region
    _
  $region9: #{quadruple_conv_forward.1} parent=0 // pred_fallthru
    _
  // Predicated region
  $region10: #{quadruple_conv_forward.1} parent=0 // pred_check
    _
  $region11: #{quadruple_conv_forward.1} parent=0 // pred_check_branch
    %15 = sbr.rel (0) target = $region13
  $region12: #{quadruple_conv_forward.1} parent=0 // pred_region
    _
  $region13: #{quadruple_conv_forward.1} parent=0 // pred_fallthru
    _
  // Predicated region
  $region14: #{quadruple_conv_forward.1} parent=0 // pred_check
    _
  $region15: #{quadruple_conv_forward.1} parent=0 // pred_check_branch
    %17 = sbr.rel (0) target = $region17
  $region16: #{quadruple_conv_forward.1} parent=0 // pred_region
    _
  $region17: #{quadruple_conv_forward.1} parent=0 // pred_fallthru
    _
  // Predicated region
  $region18: #{quadruple_conv_forward.1} parent=0 // pred_check
    _
  $region19: #{quadruple_conv_forward.1} parent=0 // pred_check_branch
    %19 = sbr.rel (0) target = $region21
  $region20: #{quadruple_conv_forward.1} parent=0 // pred_region
    _
  $region21: #{quadruple_conv_forward.1} parent=0 // pred_fallthru
    _
  %v21 = vld [vmem:[%s1] sm:$0x3f]
  %v23 = vlaneseq
  %v24 = vshrl.u32 %v23, 7
  %v25 = vsub.s32 0, %v24
  %v26 = vrot.slane %v21, %v25
  %v27 = vlaneseq
  %v28 = vshrl.u32 %v27, 7
  %v29 = vsub.s32 1, %v28
  %v30 = vrot.slane %v21, %v29
  %v31 = vlaneseq
  %v32 = vshrl.u32 %v31, 7
  %v33 = vsub.s32 2, %v32
  %v34 = vrot.slane %v21, %v33
  %v35 = vlaneseq
  %v36 = vshrl.u32 %v35, 7
  %v37 = vsub.s32 3, %v36
  %v38 = vrot.slane %v21, %v37
  %v39 = vlaneseq
  %v40 = vshrl.u32 %v39, 7
  %v41 = vsub.s32 4, %v40
  %v42 = vrot.slane %v21, %v41
  %v43 = vlaneseq
  %v44 = vshrl.u32 %v43, 7
  %v45 = vsub.s32 5, %v44
  %v46 = vrot.slane %v21, %v45
  %v53 = vld [vmem:[%s0] sm:$0xff]
  %v54 = vld [vmem:[%s0 + $0x8] sm:$0xff]
  %v55 = vld [vmem:[%s0 + $0x10] sm:$0xff]
  %v56 = vld [vmem:[%s0 + $0x18] sm:$0xf]
  %v60 = vcombine.high %v53, %v53
  %v61 = vcombine.high %v54, %v54
  %v62 = vcombine.high %v55, %v55
  %v66 = vpack.c.bf16 %v53, %v53
  %v67 = vpack.c.bf16 %v60, %v60
  %v68 = vpack.c.bf16 %v54, %v54
  %v69 = vpack.c.bf16 %v61, %v61
  %v70 = vpack.c.bf16 %v55, %v55
  %v71 = vpack.c.bf16 %v62, %v62
  %v72 = vpack.c.bf16 %v56, %v56
  %v73 = vld [vmem:[%s0 + $0x4] sm:$0xff]
  %v74 = vld [vmem:[%s0 + $0xc] sm:$0xff]
  %v75 = vld [vmem:[%s0 + $0x14] sm:$0xff]
  %v79 = vcombine.high %v73, %v73
  %v80 = vcombine.high %v74, %v74
  %v81 = vcombine.high %v75, %v75
  %v85 = vpack.c.bf16 %v73, %v73
  %v86 = vpack.c.bf16 %v79, %v79
  %v87 = vpack.c.bf16 %v74, %v74
  %v88 = vpack.c.bf16 %v80, %v80
  %v89 = vpack.c.bf16 %v75, %v75
  %v90 = vpack.c.bf16 %v81, %v81
  %v91 = vld [vmem:[%s0 + $0x4] sm:$0xff]
  %v92 = vld [vmem:[%s0 + $0xc] sm:$0xff]
  %v93 = vld [vmem:[%s0 + $0x14] sm:$0xff]
  %v94 = vld [vmem:[%s0 + $0x1c] sm:$0xf]
  %v98 = vcombine.high %v91, %v91
  %v99 = vcombine.high %v92, %v92
  %v100 = vcombine.high %v93, %v93
  %v104 = vpack.c.bf16 %v91, %v91
  %v105 = vpack.c.bf16 %v98, %v98
  %v106 = vpack.c.bf16 %v92, %v92
  %v107 = vpack.c.bf16 %v99, %v99
  %v108 = vpack.c.bf16 %v93, %v93
  %v109 = vpack.c.bf16 %v100, %v100
  %v110 = vpack.c.bf16 %v94, %v94
  %v118 = vrot.slane %v66, 6
  %v119 = vrot.slane %v67, 6
  %v120 = vrot.slane %v68, 6
  %v121 = vrot.slane %v69, 6
  %v122 = vrot.slane %v70, 6
  %v123 = vrot.slane %v71, 6
  %v124 = vrot.slane %v72, 6
  %125 = vrot.lane.b32.xlu0 %v118, 127
  %v126 = vpop.permute.xlu0 %125
  %127 = vrot.lane.b32.xlu0 %v119, 127
  %v128 = vpop.permute.xlu0 %127
  %129 = vrot.lane.b32.xlu0 %v120, 127
  %v130 = vpop.permute.xlu0 %129
  %131 = vrot.lane.b32.xlu0 %v121, 127
  %v132 = vpop.permute.xlu0 %131
  %133 = vrot.lane.b32.xlu0 %v122, 127
  %v134 = vpop.permute.xlu0 %133
  %135 = vrot.lane.b32.xlu0 %v123, 127
  %v136 = vpop.permute.xlu0 %135
  %137 = vrot.lane.b32.xlu0 %v124, 127
  %v138 = vpop.permute.xlu0 %137
  %vm139 = vcmask 1039360
  %v140 = vsel %vm139, %v126, %v128
  %v141 = vsel %vm139, %v128, %v130
  %v142 = vsel %vm139, %v130, %v132
  %v143 = vsel %vm139, %v132, %v134
  %v144 = vsel %vm139, %v134, %v136
  %v145 = vsel %vm139, %v136, %v138
  %v146 = vrot.slane %v66, 4
  %v147 = vrot.slane %v67, 4
  %v148 = vrot.slane %v68, 4
  %v149 = vrot.slane %v69, 4
  %v150 = vrot.slane %v70, 4
  %v151 = vrot.slane %v71, 4
  %v152 = vrot.slane %v72, 4
  %153 = vrot.lane.b32.xlu0 %v146, 126
  %v154 = vpop.permute.xlu0 %153
  %155 = vrot.lane.b32.xlu0 %v147, 126
  %v156 = vpop.permute.xlu0 %155
  %157 = vrot.lane.b32.xlu0 %v148, 126
  %v158 = vpop.permute.xlu0 %157
  %159 = vrot.lane.b32.xlu0 %v149, 126
  %v160 = vpop.permute.xlu0 %159
  %161 = vrot.lane.b32.xlu0 %v150, 126
  %v162 = vpop.permute.xlu0 %161
  %163 = vrot.lane.b32.xlu0 %v151, 126
  %v164 = vpop.permute.xlu0 %163
  %165 = vrot.lane.b32.xlu0 %v152, 126
  %v166 = vpop.permute.xlu0 %165
  %vm167 = vcmask 1031168
  %v168 = vsel %vm167, %v154, %v156
  %v169 = vsel %vm167, %v156, %v158
  %v170 = vsel %vm167, %v158, %v160
  %v171 = vsel %vm167, %v160, %v162
  %v172 = vsel %vm167, %v162, %v164
  %v173 = vsel %vm167, %v164, %v166
  %v174 = vrot.slane %v66, 2
  %v175 = vrot.slane %v67, 2
  %v176 = vrot.slane %v68, 2
  %v177 = vrot.slane %v69, 2
  %v178 = vrot.slane %v70, 2
  %v179 = vrot.slane %v71, 2
  %v180 = vrot.slane %v72, 2
  %181 = vrot.lane.b32.xlu0 %v174, 110
  %v182 = vpop.permute.xlu0 %181
  %183 = vrot.lane.b32.xlu0 %v175, 110
  %v184 = vpop.permute.xlu0 %183
  %185 = vrot.lane.b32.xlu0 %v176, 110
  %v186 = vpop.permute.xlu0 %185
  %187 = vrot.lane.b32.xlu0 %v177, 110
  %v188 = vpop.permute.xlu0 %187
  %189 = vrot.lane.b32.xlu0 %v178, 110
  %v190 = vpop.permute.xlu0 %189
  %191 = vrot.lane.b32.xlu0 %v179, 110
  %v192 = vpop.permute.xlu0 %191
  %193 = vrot.lane.b32.xlu0 %v180, 110
  %v194 = vpop.permute.xlu0 %193
  %vm195 = vcmask 900096
  %v196 = vsel %vm195, %v182, %v184
  %v197 = vsel %vm195, %v184, %v186
  %v198 = vsel %vm195, %v186, %v188
  %v199 = vsel %vm195, %v188, %v190
  %v200 = vsel %vm195, %v190, %v192
  %v201 = vsel %vm195, %v192, %v194
  %208 = vrot.lane.b32.xlu0 %v85, 109
  %v209 = vpop.permute.xlu0 %208
  %210 = vrot.lane.b32.xlu0 %v86, 109
  %v211 = vpop.permute.xlu0 %210
  %212 = vrot.lane.b32.xlu0 %v87, 109
  %v213 = vpop.permute.xlu0 %212
  %214 = vrot.lane.b32.xlu0 %v88, 109
  %v215 = vpop.permute.xlu0 %214
  %216 = vrot.lane.b32.xlu0 %v89, 109
  %v217 = vpop.permute.xlu0 %216
  %218 = vrot.lane.b32.xlu0 %v90, 109
  %v219 = vpop.permute.xlu0 %218
  %vm220 = vcmask 891904
  %v221 = vsel %vm220, %v209, %v211
  %v222 = vsel %vm220, %v211, %v213
  %v223 = vsel %vm220, %v213, %v215
  %v224 = vsel %vm220, %v215, %v217
  %v225 = vsel %vm220, %v217, %v219
  %v233 = vrot.slane %v104, 6
  %v234 = vrot.slane %v105, 6
  %v235 = vrot.slane %v106, 6
  %v236 = vrot.slane %v107, 6
  %v237 = vrot.slane %v108, 6
  %v238 = vrot.slane %v109, 6
  %v239 = vrot.slane %v110, 6
  %240 = vrot.lane.b32.xlu0 %v233, 108
  %v241 = vpop.permute.xlu0 %240
  %242 = vrot.lane.b32.xlu0 %v234, 108
  %v243 = vpop.permute.xlu0 %242
  %244 = vrot.lane.b32.xlu0 %v235, 108
  %v245 = vpop.permute.xlu0 %244
  %246 = vrot.lane.b32.xlu0 %v236, 108
  %v247 = vpop.permute.xlu0 %246
  %248 = vrot.lane.b32.xlu0 %v237, 108
  %v249 = vpop.permute.xlu0 %248
  %250 = vrot.lane.b32.xlu0 %v238, 108
  %v251 = vpop.permute.xlu0 %250
  %252 = vrot.lane.b32.xlu0 %v239, 108
  %v253 = vpop.permute.xlu0 %252
  %vm254 = vcmask 883712
  %v255 = vsel %vm254, %v241, %v243
  %v256 = vsel %vm254, %v243, %v245
  %v257 = vsel %vm254, %v245, %v247
  %v258 = vsel %vm254, %v247, %v249
  %v259 = vsel %vm254, %v249, %v251
  %v260 = vsel %vm254, %v251, %v253
  %v261 = vrot.slane %v104, 4
  %v262 = vrot.slane %v105, 4
  %v263 = vrot.slane %v106, 4
  %v264 = vrot.slane %v107, 4
  %v265 = vrot.slane %v108, 4
  %v266 = vrot.slane %v109, 4
  %v267 = vrot.slane %v110, 4
  %268 = vrot.lane.b32.xlu0 %v261, 92
  %v269 = vpop.permute.xlu0 %268
  %270 = vrot.lane.b32.xlu0 %v262, 92
  %v271 = vpop.permute.xlu0 %270
  %272 = vrot.lane.b32.xlu0 %v263, 92
  %v273 = vpop.permute.xlu0 %272
  %274 = vrot.lane.b32.xlu0 %v264, 92
  %v275 = vpop.permute.xlu0 %274
  %276 = vrot.lane.b32.xlu0 %v265, 92
  %v277 = vpop.permute.xlu0 %276
  %278 = vrot.lane.b32.xlu0 %v266, 92
  %v279 = vpop.permute.xlu0 %278
  %280 = vrot.lane.b32.xlu0 %v267, 92
  %v281 = vpop.permute.xlu0 %280
  %vm282 = vcmask 752640
  %v283 = vsel %vm282, %v269, %v271
  %v284 = vsel %vm282, %v271, %v273
  %v285 = vsel %vm282, %v273, %v275
  %v286 = vsel %vm282, %v275, %v277
  %v287 = vsel %vm282, %v277, %v279
  %v288 = vsel %vm282, %v279, %v281
  %v289 = vrot.slane %v104, 2
  %v290 = vrot.slane %v105, 2
  %v291 = vrot.slane %v106, 2
  %v292 = vrot.slane %v107, 2
  %v293 = vrot.slane %v108, 2
  %v294 = vrot.slane %v109, 2
  %v295 = vrot.slane %v110, 2
  %296 = vrot.lane.b32.xlu0 %v289, 91
  %v297 = vpop.permute.xlu0 %296
  %298 = vrot.lane.b32.xlu0 %v290, 91
  %v299 = vpop.permute.xlu0 %298
  %300 = vrot.lane.b32.xlu0 %v291, 91
  %v301 = vpop.permute.xlu0 %300
  %302 = vrot.lane.b32.xlu0 %v292, 91
  %v303 = vpop.permute.xlu0 %302
  %304 = vrot.lane.b32.xlu0 %v293, 91
  %v305 = vpop.permute.xlu0 %304
  %306 = vrot.lane.b32.xlu0 %v294, 91
  %v307 = vpop.permute.xlu0 %306
  %308 = vrot.lane.b32.xlu0 %v295, 91
  %v309 = vpop.permute.xlu0 %308
  %vm310 = vcmask 744448
  %v311 = vsel %vm310, %v297, %v299
  %v312 = vsel %vm310, %v299, %v301
  %v313 = vsel %vm310, %v301, %v303
  %v314 = vsel %vm310, %v303, %v305
  %v315 = vsel %vm310, %v305, %v307
  %v316 = vsel %vm310, %v307, %v309
  %317 = vrot.lane.b32.xlu0 %v104, 90
  %v318 = vpop.permute.xlu0 %317
  %319 = vrot.lane.b32.xlu0 %v105, 90
  %v320 = vpop.permute.xlu0 %319
  %321 = vrot.lane.b32.xlu0 %v106, 90
  %v322 = vpop.permute.xlu0 %321
  %323 = vrot.lane.b32.xlu0 %v107, 90
  %v324 = vpop.permute.xlu0 %323
  %325 = vrot.lane.b32.xlu0 %v108, 90
  %v326 = vpop.permute.xlu0 %325
  %327 = vrot.lane.b32.xlu0 %v109, 90
  %v328 = vpop.permute.xlu0 %327
  %329 = vrot.lane.b32.xlu0 %v110, 90
  %v330 = vpop.permute.xlu0 %329
  %vm331 = vcmask 736256
  %v332 = vsel %vm331, %v318, %v320
  %v333 = vsel %vm331, %v320, %v322
  %v334 = vsel %vm331, %v322, %v324
  %v335 = vsel %vm331, %v324, %v326
  %v336 = vsel %vm331, %v326, %v328
  %v337 = vsel %vm331, %v328, %v330
  %vm338 = vcmask 1041408
  %v341 = vsel %vm338, %v66, %v140
  %v344 = vsel %vm338, %v67, %v141
  %v347 = vsel %vm338, %v68, %v142
  %v350 = vsel %vm338, %v69, %v143
  %v353 = vsel %vm338, %v70, %v144
  %v356 = vsel %vm338, %v71, %v145
  %v359 = vsel %vm338, %v72, %v138
  %vm360 = vcmask 1043456
  %v362 = vsel %vm360, %v341, %v168
  %v364 = vsel %vm360, %v344, %v169
  %v366 = vsel %vm360, %v347, %v170
  %v368 = vsel %vm360, %v350, %v171
  %v370 = vsel %vm360, %v353, %v172
  %v372 = vsel %vm360, %v356, %v173
  %v374 = vsel %vm360, %v359, %v166
  %vm375 = vcmask 1045504
  %v377 = vsel %vm375, %v362, %v196
  %v379 = vsel %vm375, %v364, %v197
  %v381 = vsel %vm375, %v366, %v198
  %v383 = vsel %vm375, %v368, %v199
  %v385 = vsel %vm375, %v370, %v200
  %v387 = vsel %vm375, %v372, %v201
  %v389 = vsel %vm375, %v374, %v194
  %v392 = vsel %vm338, %v209, %v241
  %v395 = vsel %vm338, %v221, %v255
  %v398 = vsel %vm338, %v222, %v256
  %v401 = vsel %vm338, %v223, %v257
  %v404 = vsel %vm338, %v224, %v258
  %v407 = vsel %vm338, %v225, %v259
  %v410 = vsel %vm338, %v219, %v260
  %v412 = vsel %vm360, %v392, %v269
  %v414 = vsel %vm360, %v395, %v283
  %v416 = vsel %vm360, %v398, %v284
  %v418 = vsel %vm360, %v401, %v285
  %v420 = vsel %vm360, %v404, %v286
  %v422 = vsel %vm360, %v407, %v287
  %v424 = vsel %vm360, %v410, %v288
  %v426 = vsel %vm375, %v412, %v297
  %v428 = vsel %vm375, %v414, %v311
  %v430 = vsel %vm375, %v416, %v312
  %v432 = vsel %vm375, %v418, %v313
  %v434 = vsel %vm375, %v420, %v314
  %v436 = vsel %vm375, %v422, %v315
  %v438 = vsel %vm375, %v424, %v316
  %v439 = vld [vmem:[%s2] sm:$0xf]
  %v440 = vld [vmem:[%s2 + $0x4] sm:$0xf]
  %v443 = vunpack.c.l.b16 %v439
  %v444 = vunpack.c.l.b16 %v440
  %v445 = vpack.c.b16 %v444, %v443
  %460 = vrot.lane.b32.xlu0 %v377, 19
  %v461 = vpop.permute.xlu0 %460
  %462 = vrot.lane.b32.xlu0 %v379, 19
  %v463 = vpop.permute.xlu0 %462
  %464 = vrot.lane.b32.xlu0 %v381, 19
  %v465 = vpop.permute.xlu0 %464
  %466 = vrot.lane.b32.xlu0 %v383, 19
  %v467 = vpop.permute.xlu0 %466
  %468 = vrot.lane.b32.xlu0 %v385, 19
  %v469 = vpop.permute.xlu0 %468
  %470 = vrot.lane.b32.xlu0 %v387, 19
  %v471 = vpop.permute.xlu0 %470
  %472 = vrot.lane.b32.xlu0 %v389, 19
  %v473 = vpop.permute.xlu0 %472
  %474 = vrot.lane.b32.xlu0 %v426, 19
  %v475 = vpop.permute.xlu0 %474
  %476 = vrot.lane.b32.xlu0 %v428, 19
  %v477 = vpop.permute.xlu0 %476
  %478 = vrot.lane.b32.xlu0 %v430, 19
  %v479 = vpop.permute.xlu0 %478
  %480 = vrot.lane.b32.xlu0 %v432, 19
  %v481 = vpop.permute.xlu0 %480
  %482 = vrot.lane.b32.xlu0 %v434, 19
  %v483 = vpop.permute.xlu0 %482
  %484 = vrot.lane.b32.xlu0 %v436, 19
  %v485 = vpop.permute.xlu0 %484
  %486 = vrot.lane.b32.xlu0 %v438, 19
  %v487 = vpop.permute.xlu0 %486
  %488 = vrot.lane.b32.xlu0 %v318, 19
  %v489 = vpop.permute.xlu0 %488
  %490 = vrot.lane.b32.xlu0 %v332, 19
  %v491 = vpop.permute.xlu0 %490
  %492 = vrot.lane.b32.xlu0 %v333, 19
  %v493 = vpop.permute.xlu0 %492
  %494 = vrot.lane.b32.xlu0 %v334, 19
  %v495 = vpop.permute.xlu0 %494
  %496 = vrot.lane.b32.xlu0 %v335, 19
  %v497 = vpop.permute.xlu0 %496
  %498 = vrot.lane.b32.xlu0 %v336, 19
  %v499 = vpop.permute.xlu0 %498
  %500 = vrot.lane.b32.xlu0 %v337, 19
  %v501 = vpop.permute.xlu0 %500
  %vm502 = vcmask 154624
  %v503 = vsel %vm502, %v461, %v463
  %v504 = vsel %vm502, %v463, %v465
  %v505 = vsel %vm502, %v465, %v467
  %v506 = vsel %vm502, %v467, %v469
  %v507 = vsel %vm502, %v469, %v471
  %v508 = vsel %vm502, %v471, %v473
  %v509 = vsel %vm502, %v475, %v477
  %v510 = vsel %vm502, %v477, %v479
  %v511 = vsel %vm502, %v479, %v481
  %v512 = vsel %vm502, %v481, %v483
  %v513 = vsel %vm502, %v483, %v485
  %v514 = vsel %vm502, %v485, %v487
  %v515 = vsel %vm502, %v489, %v491
  %v516 = vsel %vm502, %v491, %v493
  %v517 = vsel %vm502, %v493, %v495
  %v518 = vsel %vm502, %v495, %v497
  %v519 = vsel %vm502, %v497, %v499
  %v520 = vsel %vm502, %v499, %v501
  %vm533 = vcmask 293888
  %v535 = vsel %vm533, %v445, 0
  %v538 = vsel %vm338, %v515, 0
  %v541 = vsel %vm338, %v516, 0
  %v544 = vsel %vm338, %v517, 0
  %v547 = vsel %vm338, %v518, 0
  %v550 = vsel %vm338, %v519, 0
  %v553 = vsel %vm338, %v520, 0
  %555 = vmatprep.subr.bf16.mxu0 %v504
  %556 = vmatpush1.bf16.msra.mxu0 %v503
  %557 = vmatprep.subr.bf16.mxu0 %v510
  %558 = vmatpush1.bf16.msra.mxu0 %v509
  %559 = vmatprep.subr.bf16.mxu0 %v541
  %560 = vmatpush1.bf16.msra.mxu0 %v538
  %561 = vmatprep.subr.bf16.mxu0 0
  %562 = vmatpush1.bf16.msra.mxu0 0
  %563 = vmatprep.subr.bf16.mxu0 0
  %564 = vmatpush1.bf16.msra.mxu0 0
  %565 = vmatprep.subr.bf16.mxu0 0
  %566 = vmatpush1.bf16.msra.mxu0 0
  %567 = vmatprep.subr.bf16.mxu0 0
  %568 = vmatpush1.bf16.msra.mxu0 0
  %569 = vmatprep.subr.bf16.mxu0 0
  %570 = vmatpush1.bf16.msra.mxu0 0
  %571 = vmatprep.subr.bf16.mxu0 0
  %572 = vmatpush1.bf16.msra.mxu0 0
  %573 = vmatprep.subr.bf16.mxu0 0
  %574 = vmatpush1.bf16.msra.mxu0 0
  %575 = vmatprep.subr.bf16.mxu0 0
  %576 = vmatpush1.bf16.msra.mxu0 0
  %577 = vmatprep.subr.bf16.mxu0 0
  %578 = vmatpush1.bf16.msra.mxu0 0
  %579 = vmatprep.subr.bf16.mxu0 0
  %580 = vmatpush1.bf16.msra.mxu0 0
  %581 = vmatprep.subr.bf16.mxu0 0
  %582 = vmatpush1.bf16.msra.mxu0 0
  %583 = vmatprep.subr.bf16.mxu0 0
  %584 = vmatpush1.bf16.msra.mxu0 0
  %585 = vmatprep.subr.bf16.mxu0 0
  %586 = vmatpush1.bf16.msra.mxu0 0
  %587 = vmatprep.mubr.bf16.mxu0 0
  %588 = vmatmul.mubr.bf16.gmra.mrb[0].mxu0 %v535
  %v589 = vpop.f32.mrb[0].mxu0
  %v590 = vadd.f32 0.0, %v589
  %v591 = vpop.f32.mrb[0].mxu0
  %v592 = vadd.f32 0.0, %v591
  %v593 = vpop.f32.mrb[0].mxu0
  %v594 = vadd.f32 0.0, %v593
  %v595 = vpop.f32.mrb[0].mxu0
  %v596 = vadd.f32 0.0, %v595
  %597 = vdwg.mxu0
  %598 = vmatprep.subr.bf16.mxu0 %v506
  %599 = vmatpush1.bf16.msra.mxu0 %v505
  %600 = vmatprep.subr.bf16.mxu0 %v512
  %601 = vmatpush1.bf16.msra.mxu0 %v511
  %602 = vmatprep.subr.bf16.mxu0 %v547
  %603 = vmatpush1.bf16.msra.mxu0 %v544
  %604 = vmatprep.subr.bf16.mxu0 0
  %605 = vmatpush1.bf16.msra.mxu0 0
  %606 = vmatprep.subr.bf16.mxu0 0
  %607 = vmatpush1.bf16.msra.mxu0 0
  %608 = vmatprep.subr.bf16.mxu0 0
  %609 = vmatpush1.bf16.msra.mxu0 0
  %610 = vmatprep.subr.bf16.mxu0 0
  %611 = vmatpush1.bf16.msra.mxu0 0
  %612 = vmatprep.subr.bf16.mxu0 0
  %613 = vmatpush1.bf16.msra.mxu0 0
  %614 = vmatprep.subr.bf16.mxu0 0
  %615 = vmatpush1.bf16.msra.mxu0 0
  %616 = vmatprep.subr.bf16.mxu0 0
  %617 = vmatpush1.bf16.msra.mxu0 0
  %618 = vmatprep.subr.bf16.mxu0 0
  %619 = vmatpush1.bf16.msra.mxu0 0
  %620 = vmatprep.subr.bf16.mxu0 0
  %621 = vmatpush1.bf16.msra.mxu0 0
  %622 = vmatprep.subr.bf16.mxu0 0
  %623 = vmatpush1.bf16.msra.mxu0 0
  %624 = vmatprep.subr.bf16.mxu0 0
  %625 = vmatpush1.bf16.msra.mxu0 0
  %626 = vmatprep.subr.bf16.mxu0 0
  %627 = vmatpush1.bf16.msra.mxu0 0
  %628 = vmatprep.subr.bf16.mxu0 0
  %629 = vmatpush1.bf16.msra.mxu0 0
  %630 = vmatprep.mubr.bf16.mxu0 0
  %631 = vmatmul.mubr.bf16.gmra.mrb[0].mxu0 %v535
  %v632 = vpop.f32.mrb[0].mxu0
  %v633 = vadd.f32 0.0, %v632
  %v634 = vpop.f32.mrb[0].mxu0
  %v635 = vadd.f32 0.0, %v634
  %v636 = vpop.f32.mrb[0].mxu0
  %v637 = vadd.f32 0.0, %v636
  %v638 = vpop.f32.mrb[0].mxu0
  %v639 = vadd.f32 0.0, %v638
  %640 = vdwg.mxu0
  %641 = vmatprep.subr.bf16.mxu0 %v508
  %642 = vmatpush1.bf16.msra.mxu0 %v507
  %643 = vmatprep.subr.bf16.mxu0 %v514
  %644 = vmatpush1.bf16.msra.mxu0 %v513
  %645 = vmatprep.subr.bf16.mxu0 %v553
  %646 = vmatpush1.bf16.msra.mxu0 %v550
  %647 = vmatprep.subr.bf16.mxu0 0
  %648 = vmatpush1.bf16.msra.mxu0 0
  %649 = vmatprep.subr.bf16.mxu0 0
  %650 = vmatpush1.bf16.msra.mxu0 0
  %651 = vmatprep.subr.bf16.mxu0 0
  %652 = vmatpush1.bf16.msra.mxu0 0
  %653 = vmatprep.subr.bf16.mxu0 0
  %654 = vmatpush1.bf16.msra.mxu0 0
  %655 = vmatprep.subr.bf16.mxu0 0
  %656 = vmatpush1.bf16.msra.mxu0 0
  %657 = vmatprep.subr.bf16.mxu0 0
  %658 = vmatpush1.bf16.msra.mxu0 0
  %659 = vmatprep.subr.bf16.mxu0 0
  %660 = vmatpush1.bf16.msra.mxu0 0
  %661 = vmatprep.subr.bf16.mxu0 0
  %662 = vmatpush1.bf16.msra.mxu0 0
  %663 = vmatprep.subr.bf16.mxu0 0
  %664 = vmatpush1.bf16.msra.mxu0 0
  %665 = vmatprep.subr.bf16.mxu0 0
  %666 = vmatpush1.bf16.msra.mxu0 0
  %667 = vmatprep.subr.bf16.mxu0 0
  %668 = vmatpush1.bf16.msra.mxu0 0
  %669 = vmatprep.subr.bf16.mxu0 0
  %670 = vmatpush1.bf16.msra.mxu0 0
  %671 = vmatprep.subr.bf16.mxu0 0
  %672 = vmatpush1.bf16.msra.mxu0 0
  %673 = vmatprep.mubr.bf16.mxu0 0
  %674 = vmatmul.mubr.bf16.gmra.mrb[0].mxu0 %v535
  %v675 = vpop.f32.mrb[0].mxu0
  %v676 = vadd.f32 0.0, %v675
  %v677 = vpop.f32.mrb[0].mxu0
  %v678 = vadd.f32 0.0, %v677
  %v679 = vpop.f32.mrb[0].mxu0
  %v680 = vadd.f32 0.0, %v679
  %v681 = vpop.f32.mrb[0].mxu0
  %v682 = vadd.f32 0.0, %v681
  %683 = vdwg.mxu0
  %v684 = vld [vmem:[%s4] sm:$0xff]
  %v685 = vmul.f32 %v594, %v26
  %v686 = vmul.f32 %v596, %v30
  %v687 = vmul.f32 %v637, %v34
  %v688 = vmul.f32 %v639, %v38
  %v689 = vmul.f32 %v680, %v42
  %v690 = vmul.f32 %v682, %v46
  %v691 = vadd.f32 %v685, %v686
  %v692 = vadd.f32 %v691, %v687
  %v693 = vadd.f32 %v692, %v688
  %v694 = vadd.f32 %v693, %v689
  %v695 = vadd.f32 %v694, %v690
  %696 = vadd.xlane.f32.xlu0 %v695
  %v697 = vpop.xlane.xlu0 %696
  %v698 = vmul.f32 %v697, 0.001953125
  %v699 = vmul.f32 %v685, %v594
  %v700 = vmul.f32 %v686, %v596
  %v701 = vmul.f32 %v687, %v637
  %v702 = vmul.f32 %v688, %v639
  %v703 = vmul.f32 %v689, %v680
  %v704 = vmul.f32 %v690, %v682
  %v705 = vadd.f32 %v699, %v700
  %v706 = vadd.f32 %v705, %v701
  %v707 = vadd.f32 %v706, %v702
  %v708 = vadd.f32 %v707, %v703
  %v709 = vadd.f32 %v708, %v704
  %710 = vadd.xlane.f32.xlu0 %v709
  %v711 = vpop.xlane.xlu0 %710
  %v712 = vmul.f32 %v711, 0.001953125
  %v713 = vmul.f32 %v698, %v698
  %v714 = vsub.f32 %v712, %v713
  %v715 = vadd.f32 %v714, 1e-05
  %v716 = vrsqrt.pop %v715
  %v717 = vmul.f32 %v684, %v716
  %719 = vset.pattern.permute.xlu0 8
  %720 = vperm.xlu0 %719, %v717
  %v721 = vpop.permute.xlu0 %720
  %v723 = vmul.f32 %v594, %v721
  %v724 = vmul.f32 %v596, %v721
  %v725 = vmul.f32 %v637, %v721
  %v726 = vmul.f32 %v639, %v721
  %v727 = vmul.f32 %v680, %v721
  %v728 = vmul.f32 %v682, %v721
  %v729 = vmul.f32 %v698, %v717
  %731 = vrot.lane.b32.xlu0 %v729, 1
  %v732 = vpop.permute.xlu0 %731
  %v734 = vsub.f32 %v684, %v732
  %736 = vset.pattern.permute.xlu0 9
  %737 = vperm.xlu0 %736, %v734
  %v738 = vpop.permute.xlu0 %737
  %v740 = vadd.f32 %v723, %v738
  %v741 = vadd.f32 %v724, %v738
  %v742 = vadd.f32 %v725, %v738
  %v743 = vadd.f32 %v726, %v738
  %v744 = vadd.f32 %v727, %v738
  %v745 = vadd.f32 %v728, %v738
  %v746 = vmul.f32 %v590, %v26
  %v747 = vmul.f32 %v592, %v30
  %v748 = vmul.f32 %v633, %v34
  %v749 = vmul.f32 %v635, %v38
  %v750 = vmul.f32 %v676, %v42
  %v751 = vmul.f32 %v678, %v46
  %v752 = vadd.f32 %v746, %v747
  %v753 = vadd.f32 %v752, %v748
  %v754 = vadd.f32 %v753, %v749
  %v755 = vadd.f32 %v754, %v750
  %v756 = vadd.f32 %v755, %v751
  %757 = vadd.xlane.f32.xlu0 %v756
  %v758 = vpop.xlane.xlu0 %757
  %v759 = vmul.f32 %v758, 0.001953125
  %v760 = vmul.f32 %v746, %v590
  %v761 = vmul.f32 %v747, %v592
  %v762 = vmul.f32 %v748, %v633
  %v763 = vmul.f32 %v749, %v635
  %v764 = vmul.f32 %v750, %v676
  %v765 = vmul.f32 %v751, %v678
  %v766 = vadd.f32 %v760, %v761
  %v767 = vadd.f32 %v766, %v762
  %v768 = vadd.f32 %v767, %v763
  %v769 = vadd.f32 %v768, %v764
  %v770 = vadd.f32 %v769, %v765
  %771 = vadd.xlane.f32.xlu0 %v770
  %v772 = vpop.xlane.xlu0 %771
  %v773 = vmul.f32 %v772, 0.001953125
  %v774 = vmul.f32 %v759, %v759
  %v775 = vsub.f32 %v773, %v774
  %v776 = vadd.f32 %v775, 1e-05
  %v777 = vrsqrt.pop %v776
  %v778 = vmul.f32 %v684, %v777
  %780 = vset.pattern.permute.xlu0 0
  %781 = vperm.xlu0 %780, %v778
  %v782 = vpop.permute.xlu0 %781
  %v784 = vmul.f32 %v590, %v782
  %v785 = vmul.f32 %v592, %v782
  %v786 = vmul.f32 %v633, %v782
  %v787 = vmul.f32 %v635, %v782
  %v788 = vmul.f32 %v676, %v782
  %v789 = vmul.f32 %v678, %v782
  %v790 = vmul.f32 %v759, %v778
  %792 = vrot.lane.b32.xlu0 %v790, 1
  %v793 = vpop.permute.xlu0 %792
  %v795 = vsub.f32 %v684, %v793
  %797 = vset.pattern.permute.xlu0 1
  %798 = vperm.xlu0 %797, %v795
  %v799 = vpop.permute.xlu0 %798
  %v801 = vadd.f32 %v784, %v799
  %v802 = vadd.f32 %v785, %v799
  %v803 = vadd.f32 %v786, %v799
  %v804 = vadd.f32 %v787, %v799
  %v805 = vadd.f32 %v788, %v799
  %v806 = vadd.f32 %v789, %v799
  %807 = vst [vmem:[#allocation2] sm:$0xf] 0
  %808 = vst [vmem:[#allocation2 + $0x1c] sm:$0xf] 0
  %v809 = vmax.f32 %v801, 0.0
  %v810 = vmax.f32 %v802, 0.0
  %v811 = vmax.f32 %v803, 0.0
  %v812 = vmax.f32 %v804, 0.0
  %v813 = vmax.f32 %v805, 0.0
  %v814 = vmax.f32 %v806, 0.0
  %v815 = vmul.f32 %v809, %v26
  %v816 = vmul.f32 %v810, %v30
  %v817 = vmul.f32 %v811, %v34
  %v818 = vmul.f32 %v812, %v38
  %v819 = vmul.f32 %v813, %v42
  %v820 = vmul.f32 %v814, %v46
  %v821 = vpack.c.bf16 %v815, %v815
  %v822 = vpack.c.bf16 %v816, %v816
  %v823 = vpack.c.bf16 %v817, %v817
  %v824 = vpack.c.bf16 %v818, %v818
  %v825 = vpack.c.bf16 %v819, %v819
  %v826 = vpack.c.bf16 %v820, %v820
  %v833 = vunpack.c.l.b16 %v821
  %v834 = vunpack.c.l.b16 %v822
  %v835 = vunpack.c.l.b16 %v823
  %v836 = vunpack.c.l.b16 %v824
  %v837 = vunpack.c.l.b16 %v825
  %v838 = vunpack.c.l.b16 %v826
  %v839 = vpack.c.b16 %v834, %v833
  %v840 = vpack.c.b16 %v836, %v835
  %v841 = vpack.c.b16 %v838, %v837
  %845 = vst [vmem:[#allocation2 + $0x4] sm:$0xff] %v839
  %846 = vst [vmem:[#allocation2 + $0xc] sm:$0xff] %v840
  %847 = vst [vmem:[#allocation2 + $0x14] sm:$0xff] %v841
  %v848 = vld [vmem:[#allocation2] sm:$0xff]
  %v849 = vld [vmem:[#allocation2 + $0x8] sm:$0xff]
  %v850 = vld [vmem:[#allocation2 + $0x10] sm:$0xff]
  %v851 = vld [vmem:[#allocation2 + $0x18] sm:$0xf]
  %v852 = vld [vmem:[#allocation2 + $0x4] sm:$0xff]
  %v853 = vld [vmem:[#allocation2 + $0xc] sm:$0xff]
  %v854 = vld [vmem:[#allocation2 + $0x14] sm:$0xff]
  %v855 = vld [vmem:[#allocation2 + $0x4] sm:$0xff]
  %v856 = vld [vmem:[#allocation2 + $0xc] sm:$0xff]
  %v857 = vld [vmem:[#allocation2 + $0x14] sm:$0xff]
  %v858 = vld [vmem:[#allocation2 + $0x1c] sm:$0xf]
  %v863 = vunpack.c.l.b16 %v848
  %v864 = vunpack.c.h.b16 %v848
  %v865 = vunpack.c.l.b16 %v849
  %v866 = vunpack.c.h.b16 %v849
  %v867 = vunpack.c.l.b16 %v850
  %v868 = vunpack.c.h.b16 %v850
  %v869 = vunpack.c.l.b16 %v851
  %v870 = vpack.c.b16 %v863, %v863
  %v871 = vpack.c.b16 %v864, %v864
  %v872 = vpack.c.b16 %v865, %v865
  %v873 = vpack.c.b16 %v866, %v866
  %v874 = vpack.c.b16 %v867, %v867
  %v875 = vpack.c.b16 %v868, %v868
  %v876 = vpack.c.b16 %v869, %v869
  %877 = vrot.lane.b32.xlu0 %v870, 127
  %v878 = vpop.permute.xlu0 %877
  %879 = vrot.lane.b32.xlu0 %v871, 127
  %v880 = vpop.permute.xlu0 %879
  %881 = vrot.lane.b32.xlu0 %v872, 127
  %v882 = vpop.permute.xlu0 %881
  %883 = vrot.lane.b32.xlu0 %v873, 127
  %v884 = vpop.permute.xlu0 %883
  %885 = vrot.lane.b32.xlu0 %v874, 127
  %v886 = vpop.permute.xlu0 %885
  %887 = vrot.lane.b32.xlu0 %v875, 127
  %v888 = vpop.permute.xlu0 %887
  %889 = vrot.lane.b32.xlu0 %v876, 127
  %v890 = vpop.permute.xlu0 %889
  %v891 = vsel %vm139, %v878, %v880
  %v892 = vsel %vm139, %v880, %v882
  %v893 = vsel %vm139, %v882, %v884
  %v894 = vsel %vm139, %v884, %v886
  %v895 = vsel %vm139, %v886, %v888
  %v896 = vsel %vm139, %v888, %v890
  %897 = vrot.lane.b32.xlu0 %v870, 126
  %v898 = vpop.permute.xlu0 %897
  %899 = vrot.lane.b32.xlu0 %v871, 126
  %v900 = vpop.permute.xlu0 %899
  %901 = vrot.lane.b32.xlu0 %v872, 126
  %v902 = vpop.permute.xlu0 %901
  %903 = vrot.lane.b32.xlu0 %v873, 126
  %v904 = vpop.permute.xlu0 %903
  %905 = vrot.lane.b32.xlu0 %v874, 126
  %v906 = vpop.permute.xlu0 %905
  %907 = vrot.lane.b32.xlu0 %v875, 126
  %v908 = vpop.permute.xlu0 %907
  %909 = vrot.lane.b32.xlu0 %v876, 126
  %v910 = vpop.permute.xlu0 %909
  %v911 = vsel %vm167, %v898, %v900
  %v912 = vsel %vm167, %v900, %v902
  %v913 = vsel %vm167, %v902, %v904
  %v914 = vsel %vm167, %v904, %v906
  %v915 = vsel %vm167, %v906, %v908
  %v916 = vsel %vm167, %v908, %v910
  %917 = vrot.lane.b32.xlu0 %v870, 110
  %v918 = vpop.permute.xlu0 %917
  %919 = vrot.lane.b32.xlu0 %v871, 110
  %v920 = vpop.permute.xlu0 %919
  %921 = vrot.lane.b32.xlu0 %v872, 110
  %v922 = vpop.permute.xlu0 %921
  %923 = vrot.lane.b32.xlu0 %v873, 110
  %v924 = vpop.permute.xlu0 %923
  %925 = vrot.lane.b32.xlu0 %v874, 110
  %v926 = vpop.permute.xlu0 %925
  %927 = vrot.lane.b32.xlu0 %v875, 110
  %v928 = vpop.permute.xlu0 %927
  %929 = vrot.lane.b32.xlu0 %v876, 110
  %v930 = vpop.permute.xlu0 %929
  %v931 = vsel %vm195, %v918, %v920
  %v932 = vsel %vm195, %v920, %v922
  %v933 = vsel %vm195, %v922, %v924
  %v934 = vsel %vm195, %v924, %v926
  %v935 = vsel %vm195, %v926, %v928
  %v936 = vsel %vm195, %v928, %v930
  %v940 = vunpack.c.l.b16 %v852
  %v941 = vunpack.c.h.b16 %v852
  %v942 = vunpack.c.l.b16 %v853
  %v943 = vunpack.c.h.b16 %v853
  %v944 = vunpack.c.l.b16 %v854
  %v945 = vunpack.c.h.b16 %v854
  %v946 = vpack.c.b16 %v940, %v940
  %v947 = vpack.c.b16 %v941, %v941
  %v948 = vpack.c.b16 %v942, %v942
  %v949 = vpack.c.b16 %v943, %v943
  %v950 = vpack.c.b16 %v944, %v944
  %v951 = vpack.c.b16 %v945, %v945
  %952 = vrot.lane.b32.xlu0 %v946, 109
  %v953 = vpop.permute.xlu0 %952
  %954 = vrot.lane.b32.xlu0 %v947, 109
  %v955 = vpop.permute.xlu0 %954
  %956 = vrot.lane.b32.xlu0 %v948, 109
  %v957 = vpop.permute.xlu0 %956
  %958 = vrot.lane.b32.xlu0 %v949, 109
  %v959 = vpop.permute.xlu0 %958
  %960 = vrot.lane.b32.xlu0 %v950, 109
  %v961 = vpop.permute.xlu0 %960
  %962 = vrot.lane.b32.xlu0 %v951, 109
  %v963 = vpop.permute.xlu0 %962
  %v964 = vsel %vm220, %v953, %v955
  %v965 = vsel %vm220, %v955, %v957
  %v966 = vsel %vm220, %v957, %v959
  %v967 = vsel %vm220, %v959, %v961
  %v968 = vsel %vm220, %v961, %v963
  %v973 = vunpack.c.l.b16 %v855
  %v974 = vunpack.c.h.b16 %v855
  %v975 = vunpack.c.l.b16 %v856
  %v976 = vunpack.c.h.b16 %v856
  %v977 = vunpack.c.l.b16 %v857
  %v978 = vunpack.c.h.b16 %v857
  %v979 = vunpack.c.l.b16 %v858
  %v980 = vpack.c.b16 %v973, %v973
  %v981 = vpack.c.b16 %v974, %v974
  %v982 = vpack.c.b16 %v975, %v975
  %v983 = vpack.c.b16 %v976, %v976
  %v984 = vpack.c.b16 %v977, %v977
  %v985 = vpack.c.b16 %v978, %v978
  %v986 = vpack.c.b16 %v979, %v979
  %987 = vrot.lane.b32.xlu0 %v980, 108
  %v988 = vpop.permute.xlu0 %987
  %989 = vrot.lane.b32.xlu0 %v981, 108
  %v990 = vpop.permute.xlu0 %989
  %991 = vrot.lane.b32.xlu0 %v982, 108
  %v992 = vpop.permute.xlu0 %991
  %993 = vrot.lane.b32.xlu0 %v983, 108
  %v994 = vpop.permute.xlu0 %993
  %995 = vrot.lane.b32.xlu0 %v984, 108
  %v996 = vpop.permute.xlu0 %995
  %997 = vrot.lane.b32.xlu0 %v985, 108
  %v998 = vpop.permute.xlu0 %997
  %999 = vrot.lane.b32.xlu0 %v986, 108
  %v1000 = vpop.permute.xlu0 %999
  %v1001 = vsel %vm254, %v988, %v990
  %v1002 = vsel %vm254, %v990, %v992
  %v1003 = vsel %vm254, %v992, %v994
  %v1004 = vsel %vm254, %v994, %v996
  %v1005 = vsel %vm254, %v996, %v998
  %v1006 = vsel %vm254, %v998, %v1000
  %1007 = vrot.lane.b32.xlu0 %v980, 92
  %v1008 = vpop.permute.xlu0 %1007
  %1009 = vrot.lane.b32.xlu0 %v981, 92
  %v1010 = vpop.permute.xlu0 %1009
  %1011 = vrot.lane.b32.xlu0 %v982, 92
  %v1012 = vpop.permute.xlu0 %1011
  %1013 = vrot.lane.b32.xlu0 %v983, 92
  %v1014 = vpop.permute.xlu0 %1013
  %1015 = vrot.lane.b32.xlu0 %v984, 92
  %v1016 = vpop.permute.xlu0 %1015
  %1017 = vrot.lane.b32.xlu0 %v985, 92
  %v1018 = vpop.permute.xlu0 %1017
  %1019 = vrot.lane.b32.xlu0 %v986, 92
  %v1020 = vpop.permute.xlu0 %1019
  %v1021 = vsel %vm282, %v1008, %v1010
  %v1022 = vsel %vm282, %v1010, %v1012
  %v1023 = vsel %vm282, %v1012, %v1014
  %v1024 = vsel %vm282, %v1014, %v1016
  %v1025 = vsel %vm282, %v1016, %v1018
  %v1026 = vsel %vm282, %v1018, %v1020
  %1027 = vrot.lane.b32.xlu0 %v980, 91
  %v1028 = vpop.permute.xlu0 %1027
  %1029 = vrot.lane.b32.xlu0 %v981, 91
  %v1030 = vpop.permute.xlu0 %1029
  %1031 = vrot.lane.b32.xlu0 %v982, 91
  %v1032 = vpop.permute.xlu0 %1031
  %1033 = vrot.lane.b32.xlu0 %v983, 91
  %v1034 = vpop.permute.xlu0 %1033
  %1035 = vrot.lane.b32.xlu0 %v984, 91
  %v1036 = vpop.permute.xlu0 %1035
  %1037 = vrot.lane.b32.xlu0 %v985, 91
  %v1038 = vpop.permute.xlu0 %1037
  %1039 = vrot.lane.b32.xlu0 %v986, 91
  %v1040 = vpop.permute.xlu0 %1039
  %v1041 = vsel %vm310, %v1028, %v1030
  %v1042 = vsel %vm310, %v1030, %v1032
  %v1043 = vsel %vm310, %v1032, %v1034
  %v1044 = vsel %vm310, %v1034, %v1036
  %v1045 = vsel %vm310, %v1036, %v1038
  %v1046 = vsel %vm310, %v1038, %v1040
  %1047 = vrot.lane.b32.xlu0 %v980, 90
  %v1048 = vpop.permute.xlu0 %1047
  %1049 = vrot.lane.b32.xlu0 %v981, 90
  %v1050 = vpop.permute.xlu0 %1049
  %1051 = vrot.lane.b32.xlu0 %v982, 90
  %v1052 = vpop.permute.xlu0 %1051
  %1053 = vrot.lane.b32.xlu0 %v983, 90
  %v1054 = vpop.permute.xlu0 %1053
  %1055 = vrot.lane.b32.xlu0 %v984, 90
  %v1056 = vpop.permute.xlu0 %1055
  %1057 = vrot.lane.b32.xlu0 %v985, 90
  %v1058 = vpop.permute.xlu0 %1057
  %1059 = vrot.lane.b32.xlu0 %v986, 90
  %v1060 = vpop.permute.xlu0 %1059
  %v1061 = vsel %vm331, %v1048, %v1050
  %v1062 = vsel %vm331, %v1050, %v1052
  %v1063 = vsel %vm331, %v1052, %v1054
  %v1064 = vsel %vm331, %v1054, %v1056
  %v1065 = vsel %vm331, %v1056, %v1058
  %v1066 = vsel %vm331, %v1058, %v1060
  %v1069 = vsel %vm360, %v870, %v891
  %v1072 = vsel %vm360, %v871, %v892
  %v1075 = vsel %vm360, %v872, %v893
  %v1078 = vsel %vm360, %v873, %v894
  %v1081 = vsel %vm360, %v874, %v895
  %v1084 = vsel %vm360, %v875, %v896
  %v1087 = vsel %vm360, %v876, %v890
  %v1090 = vsel %vm360, %v911, %v931
  %v1093 = vsel %vm360, %v912, %v932
  %v1096 = vsel %vm360, %v913, %v933
  %v1099 = vsel %vm360, %v914, %v934
  %v1102 = vsel %vm360, %v915, %v935
  %v1105 = vsel %vm360, %v916, %v936
  %v1108 = vsel %vm360, %v910, %v930
  %v1111 = vsel %vm360, %v953, %v988
  %v1114 = vsel %vm360, %v964, %v1001
  %v1117 = vsel %vm360, %v965, %v1002
  %v1120 = vsel %vm360, %v966, %v1003
  %v1123 = vsel %vm360, %v967, %v1004
  %v1126 = vsel %vm360, %v968, %v1005
  %v1129 = vsel %vm360, %v963, %v1006
  %v1132 = vsel %vm360, %v1008, %v1028
  %v1135 = vsel %vm360, %v1021, %v1041
  %v1138 = vsel %vm360, %v1022, %v1042
  %v1141 = vsel %vm360, %v1023, %v1043
  %v1144 = vsel %vm360, %v1024, %v1044
  %v1147 = vsel %vm360, %v1025, %v1045
  %v1150 = vsel %vm360, %v1026, %v1046
  %v1151 = vld [vmem:[%s3] sm:$0xf]
  %1180 = vrot.lane.b32.xlu0 %v1069, 19
  %v1181 = vpop.permute.xlu0 %1180
  %1182 = vrot.lane.b32.xlu0 %v1072, 19
  %v1183 = vpop.permute.xlu0 %1182
  %1184 = vrot.lane.b32.xlu0 %v1075, 19
  %v1185 = vpop.permute.xlu0 %1184
  %1186 = vrot.lane.b32.xlu0 %v1078, 19
  %v1187 = vpop.permute.xlu0 %1186
  %1188 = vrot.lane.b32.xlu0 %v1081, 19
  %v1189 = vpop.permute.xlu0 %1188
  %1190 = vrot.lane.b32.xlu0 %v1084, 19
  %v1191 = vpop.permute.xlu0 %1190
  %1192 = vrot.lane.b32.xlu0 %v1087, 19
  %v1193 = vpop.permute.xlu0 %1192
  %1194 = vrot.lane.b32.xlu0 %v1090, 19
  %v1195 = vpop.permute.xlu0 %1194
  %1196 = vrot.lane.b32.xlu0 %v1093, 19
  %v1197 = vpop.permute.xlu0 %1196
  %1198 = vrot.lane.b32.xlu0 %v1096, 19
  %v1199 = vpop.permute.xlu0 %1198
  %1200 = vrot.lane.b32.xlu0 %v1099, 19
  %v1201 = vpop.permute.xlu0 %1200
  %1202 = vrot.lane.b32.xlu0 %v1102, 19
  %v1203 = vpop.permute.xlu0 %1202
  %1204 = vrot.lane.b32.xlu0 %v1105, 19
  %v1205 = vpop.permute.xlu0 %1204
  %1206 = vrot.lane.b32.xlu0 %v1108, 19
  %v1207 = vpop.permute.xlu0 %1206
  %1208 = vrot.lane.b32.xlu0 %v1111, 19
  %v1209 = vpop.permute.xlu0 %1208
  %1210 = vrot.lane.b32.xlu0 %v1114, 19
  %v1211 = vpop.permute.xlu0 %1210
  %1212 = vrot.lane.b32.xlu0 %v1117, 19
  %v1213 = vpop.permute.xlu0 %1212
  %1214 = vrot.lane.b32.xlu0 %v1120, 19
  %v1215 = vpop.permute.xlu0 %1214
  %1216 = vrot.lane.b32.xlu0 %v1123, 19
  %v1217 = vpop.permute.xlu0 %1216
  %1218 = vrot.lane.b32.xlu0 %v1126, 19
  %v1219 = vpop.permute.xlu0 %1218
  %1220 = vrot.lane.b32.xlu0 %v1129, 19
  %v1221 = vpop.permute.xlu0 %1220
  %1222 = vrot.lane.b32.xlu0 %v1132, 19
  %v1223 = vpop.permute.xlu0 %1222
  %1224 = vrot.lane.b32.xlu0 %v1135, 19
  %v1225 = vpop.permute.xlu0 %1224
  %1226 = vrot.lane.b32.xlu0 %v1138, 19
  %v1227 = vpop.permute.xlu0 %1226
  %1228 = vrot.lane.b32.xlu0 %v1141, 19
  %v1229 = vpop.permute.xlu0 %1228
  %1230 = vrot.lane.b32.xlu0 %v1144, 19
  %v1231 = vpop.permute.xlu0 %1230
  %1232 = vrot.lane.b32.xlu0 %v1147, 19
  %v1233 = vpop.permute.xlu0 %1232
  %1234 = vrot.lane.b32.xlu0 %v1150, 19
  %v1235 = vpop.permute.xlu0 %1234
  %1236 = vrot.lane.b32.xlu0 %v1048, 19
  %v1237 = vpop.permute.xlu0 %1236
  %1238 = vrot.lane.b32.xlu0 %v1061, 19
  %v1239 = vpop.permute.xlu0 %1238
  %1240 = vrot.lane.b32.xlu0 %v1062, 19
  %v1241 = vpop.permute.xlu0 %1240
  %1242 = vrot.lane.b32.xlu0 %v1063, 19
  %v1243 = vpop.permute.xlu0 %1242
  %1244 = vrot.lane.b32.xlu0 %v1064, 19
  %v1245 = vpop.permute.xlu0 %1244
  %1246 = vrot.lane.b32.xlu0 %v1065, 19
  %v1247 = vpop.permute.xlu0 %1246
  %1248 = vrot.lane.b32.xlu0 %v1066, 19
  %v1249 = vpop.permute.xlu0 %1248
  %v1250 = vsel %vm502, %v1181, %v1183
  %v1251 = vsel %vm502, %v1183, %v1185
  %v1252 = vsel %vm502, %v1185, %v1187
  %v1253 = vsel %vm502, %v1187, %v1189
  %v1254 = vsel %vm502, %v1189, %v1191
  %v1255 = vsel %vm502, %v1191, %v1193
  %v1256 = vsel %vm502, %v1195, %v1197
  %v1257 = vsel %vm502, %v1197, %v1199
  %v1258 = vsel %vm502, %v1199, %v1201
  %v1259 = vsel %vm502, %v1201, %v1203
  %v1260 = vsel %vm502, %v1203, %v1205
  %v1261 = vsel %vm502, %v1205, %v1207
  %v1262 = vsel %vm502, %v1209, %v1211
  %v1263 = vsel %vm502, %v1211, %v1213
  %v1264 = vsel %vm502, %v1213, %v1215
  %v1265 = vsel %vm502, %v1215, %v1217
  %v1266 = vsel %vm502, %v1217, %v1219
  %v1267 = vsel %vm502, %v1219, %v1221
  %v1268 = vsel %vm502, %v1223, %v1225
  %v1269 = vsel %vm502, %v1225, %v1227
  %v1270 = vsel %vm502, %v1227, %v1229
  %v1271 = vsel %vm502, %v1229, %v1231
  %v1272 = vsel %vm502, %v1231, %v1233
  %v1273 = vsel %vm502, %v1233, %v1235
  %v1274 = vsel %vm502, %v1237, %v1239
  %v1275 = vsel %vm502, %v1239, %v1241
  %v1276 = vsel %vm502, %v1241, %v1243
  %v1277 = vsel %vm502, %v1243, %v1245
  %v1278 = vsel %vm502, %v1245, %v1247
  %v1279 = vsel %vm502, %v1247, %v1249
  %vm1304 = vcmask 588800
  %v1306 = vsel %vm1304, %v1151, 0
  %v1309 = vsel %vm360, %v1274, 0
  %v1312 = vsel %vm360, %v1275, 0
  %v1315 = vsel %vm360, %v1276, 0
  %v1318 = vsel %vm360, %v1277, 0
  %v1321 = vsel %vm360, %v1278, 0
  %v1324 = vsel %vm360, %v1279, 0
  %1326 = vmatprep.subr.bf16.mxu0 %v1251
  %1327 = vmatpush1.bf16.msra.mxu0 %v1250
  %1328 = vmatprep.subr.bf16.mxu0 %v1257
  %1329 = vmatpush1.bf16.msra.mxu0 %v1256
  %1330 = vmatprep.subr.bf16.mxu0 %v1263
  %1331 = vmatpush1.bf16.msra.mxu0 %v1262
  %1332 = vmatprep.subr.bf16.mxu0 %v1269
  %1333 = vmatpush1.bf16.msra.mxu0 %v1268
  %1334 = vmatprep.subr.bf16.mxu0 %v1312
  %1335 = vmatpush1.bf16.msra.mxu0 %v1309
  %1336 = vmatprep.subr.bf16.mxu0 0
  %1337 = vmatpush1.bf16.msra.mxu0 0
  %1338 = vmatprep.subr.bf16.mxu0 0
  %1339 = vmatpush1.bf16.msra.mxu0 0
  %1340 = vmatprep.subr.bf16.mxu0 0
  %1341 = vmatpush1.bf16.msra.mxu0 0
  %1342 = vmatprep.subr.bf16.mxu0 0
  %1343 = vmatpush1.bf16.msra.mxu0 0
  %1344 = vmatprep.subr.bf16.mxu0 0
  %1345 = vmatpush1.bf16.msra.mxu0 0
  %1346 = vmatprep.subr.bf16.mxu0 0
  %1347 = vmatpush1.bf16.msra.mxu0 0
  %1348 = vmatprep.subr.bf16.mxu0 0
  %1349 = vmatpush1.bf16.msra.mxu0 0
  %1350 = vmatprep.subr.bf16.mxu0 0
  %1351 = vmatpush1.bf16.msra.mxu0 0
  %1352 = vmatprep.subr.bf16.mxu0 0
  %1353 = vmatpush1.bf16.msra.mxu0 0
  %1354 = vmatprep.subr.bf16.mxu0 0
  %1355 = vmatpush1.bf16.msra.mxu0 0
  %1356 = vmatprep.subr.bf16.mxu0 0
  %1357 = vmatpush1.bf16.msra.mxu0 0
  %1358 = vmatprep.mubr.bf16.mxu0 0
  %1359 = vmatmul.mubr.bf16.gmra.mrb[0].mxu0 %v1306
  %v1360 = vpop.f32.mrb[0].mxu0
  %v1361 = vadd.f32 0.0, %v1360
  %v1362 = vpop.f32.mrb[0].mxu0
  %v1363 = vadd.f32 0.0, %v1362
  %v1364 = vpop.f32.mrb[0].mxu0
  %v1365 = vpop.f32.mrb[0].mxu0
  %1366 = vdwg.mxu0
  %1367 = vmatprep.subr.bf16.mxu0 %v1253
  %1368 = vmatpush1.bf16.msra.mxu0 %v1252
  %1369 = vmatprep.subr.bf16.mxu0 %v1259
  %1370 = vmatpush1.bf16.msra.mxu0 %v1258
  %1371 = vmatprep.subr.bf16.mxu0 %v1265
  %1372 = vmatpush1.bf16.msra.mxu0 %v1264
  %1373 = vmatprep.subr.bf16.mxu0 %v1271
  %1374 = vmatpush1.bf16.msra.mxu0 %v1270
  %1375 = vmatprep.subr.bf16.mxu0 %v1318
  %1376 = vmatpush1.bf16.msra.mxu0 %v1315
  %1377 = vmatprep.subr.bf16.mxu0 0
  %1378 = vmatpush1.bf16.msra.mxu0 0
  %1379 = vmatprep.subr.bf16.mxu0 0
  %1380 = vmatpush1.bf16.msra.mxu0 0
  %1381 = vmatprep.subr.bf16.mxu0 0
  %1382 = vmatpush1.bf16.msra.mxu0 0
  %1383 = vmatprep.subr.bf16.mxu0 0
  %1384 = vmatpush1.bf16.msra.mxu0 0
  %1385 = vmatprep.subr.bf16.mxu0 0
  %1386 = vmatpush1.bf16.msra.mxu0 0
  %1387 = vmatprep.subr.bf16.mxu0 0
  %1388 = vmatpush1.bf16.msra.mxu0 0
  %1389 = vmatprep.subr.bf16.mxu0 0
  %1390 = vmatpush1.bf16.msra.mxu0 0
  %1391 = vmatprep.subr.bf16.mxu0 0
  %1392 = vmatpush1.bf16.msra.mxu0 0
  %1393 = vmatprep.subr.bf16.mxu0 0
  %1394 = vmatpush1.bf16.msra.mxu0 0
  %1395 = vmatprep.subr.bf16.mxu0 0
  %1396 = vmatpush1.bf16.msra.mxu0 0
  %1397 = vmatprep.subr.bf16.mxu0 0
  %1398 = vmatpush1.bf16.msra.mxu0 0
  %1399 = vmatprep.mubr.bf16.mxu0 0
  %1400 = vmatmul.mubr.bf16.gmra.mrb[0].mxu0 %v1306
  %v1401 = vpop.f32.mrb[0].mxu0
  %v1402 = vadd.f32 0.0, %v1401
  %v1403 = vpop.f32.mrb[0].mxu0
  %v1404 = vadd.f32 0.0, %v1403
  %v1405 = vpop.f32.mrb[0].mxu0
  %v1406 = vpop.f32.mrb[0].mxu0
  %1407 = vdwg.mxu0
  %1408 = vmatprep.subr.bf16.mxu0 %v1255
  %1409 = vmatpush1.bf16.msra.mxu0 %v1254
  %1410 = vmatprep.subr.bf16.mxu0 %v1261
  %1411 = vmatpush1.bf16.msra.mxu0 %v1260
  %1412 = vmatprep.subr.bf16.mxu0 %v1267
  %1413 = vmatpush1.bf16.msra.mxu0 %v1266
  %1414 = vmatprep.subr.bf16.mxu0 %v1273
  %1415 = vmatpush1.bf16.msra.mxu0 %v1272
  %1416 = vmatprep.subr.bf16.mxu0 %v1324
  %1417 = vmatpush1.bf16.msra.mxu0 %v1321
  %1418 = vmatprep.subr.bf16.mxu0 0
  %1419 = vmatpush1.bf16.msra.mxu0 0
  %1420 = vmatprep.subr.bf16.mxu0 0
  %1421 = vmatpush1.bf16.msra.mxu0 0
  %1422 = vmatprep.subr.bf16.mxu0 0
  %1423 = vmatpush1.bf16.msra.mxu0 0
  %1424 = vmatprep.subr.bf16.mxu0 0
  %1425 = vmatpush1.bf16.msra.mxu0 0
  %1426 = vmatprep.subr.bf16.mxu0 0
  %1427 = vmatpush1.bf16.msra.mxu0 0
  %1428 = vmatprep.subr.bf16.mxu0 0
  %1429 = vmatpush1.bf16.msra.mxu0 0
  %1430 = vmatprep.subr.bf16.mxu0 0
  %1431 = vmatpush1.bf16.msra.mxu0 0
  %1432 = vmatprep.subr.bf16.mxu0 0
  %1433 = vmatpush1.bf16.msra.mxu0 0
  %1434 = vmatprep.subr.bf16.mxu0 0
  %1435 = vmatpush1.bf16.msra.mxu0 0
  %1436 = vmatprep.subr.bf16.mxu0 0
  %1437 = vmatpush1.bf16.msra.mxu0 0
  %1438 = vmatprep.subr.bf16.mxu0 0
  %1439 = vmatpush1.bf16.msra.mxu0 0
  %1440 = vmatprep.mubr.bf16.mxu0 0
  %1441 = vmatmul.mubr.bf16.gmra.mrb[0].mxu0 %v1306
  %v1442 = vpop.f32.mrb[0].mxu0
  %v1443 = vadd.f32 0.0, %v1442
  %v1444 = vpop.f32.mrb[0].mxu0
  %v1445 = vadd.f32 0.0, %v1444
  %v1446 = vpop.f32.mrb[0].mxu0
  %v1447 = vpop.f32.mrb[0].mxu0
  %1448 = vdwg.mxu0
  %v1449 = vld [vmem:[%s4] sm:$0xff]
  %v1450 = vmul.f32 %v1361, %v26
  %v1451 = vmul.f32 %v1363, %v30
  %v1452 = vmul.f32 %v1402, %v34
  %v1453 = vmul.f32 %v1404, %v38
  %v1454 = vmul.f32 %v1443, %v42
  %v1455 = vmul.f32 %v1445, %v46
  %v1456 = vadd.f32 %v1450, %v1451
  %v1457 = vadd.f32 %v1456, %v1452
  %v1458 = vadd.f32 %v1457, %v1453
  %v1459 = vadd.f32 %v1458, %v1454
  %v1460 = vadd.f32 %v1459, %v1455
  %1461 = vadd.xlane.f32.xlu0 %v1460
  %v1462 = vpop.xlane.xlu0 %1461
  %v1463 = vmul.f32 %v1462, 0.001953125
  %v1464 = vmul.f32 %v1450, %v1361
  %v1465 = vmul.f32 %v1451, %v1363
  %v1466 = vmul.f32 %v1452, %v1402
  %v1467 = vmul.f32 %v1453, %v1404
  %v1468 = vmul.f32 %v1454, %v1443
  %v1469 = vmul.f32 %v1455, %v1445
  %v1470 = vadd.f32 %v1464, %v1465
  %v1471 = vadd.f32 %v1470, %v1466
  %v1472 = vadd.f32 %v1471, %v1467
  %v1473 = vadd.f32 %v1472, %v1468
  %v1474 = vadd.f32 %v1473, %v1469
  %1475 = vadd.xlane.f32.xlu0 %v1474
  %v1476 = vpop.xlane.xlu0 %1475
  %v1477 = vmul.f32 %v1476, 0.001953125
  %v1478 = vmul.f32 %v1463, %v1463
  %v1479 = vsub.f32 %v1477, %v1478
  %v1480 = vadd.f32 %v1479, 1e-05
  %v1481 = vrsqrt.pop %v1480
  %v1482 = vmul.f32 %v1449, %v1481
  %1484 = vset.pattern.permute.xlu0 2
  %1485 = vperm.xlu0 %1484, %v1482
  %v1486 = vpop.permute.xlu0 %1485
  %v1488 = vmul.f32 %v1361, %v1486
  %v1489 = vmul.f32 %v1363, %v1486
  %v1490 = vmul.f32 %v1402, %v1486
  %v1491 = vmul.f32 %v1404, %v1486
  %v1492 = vmul.f32 %v1443, %v1486
  %v1493 = vmul.f32 %v1445, %v1486
  %v1494 = vmul.f32 %v1463, %v1482
  %1496 = vrot.lane.b32.xlu0 %v1494, 1
  %v1497 = vpop.permute.xlu0 %1496
  %v1499 = vsub.f32 %v1449, %v1497
  %1501 = vset.pattern.permute.xlu0 3
  %1502 = vperm.xlu0 %1501, %v1499
  %v1503 = vpop.permute.xlu0 %1502
  %v1505 = vadd.f32 %v1488, %v1503
  %v1506 = vadd.f32 %v1489, %v1503
  %v1507 = vadd.f32 %v1490, %v1503
  %v1508 = vadd.f32 %v1491, %v1503
  %v1509 = vadd.f32 %v1492, %v1503
  %v1510 = vadd.f32 %v1493, %v1503
  %v1511 = vmax.f32 %v1505, 0.0
  %v1512 = vmax.f32 %v1506, 0.0
  %v1513 = vmax.f32 %v1507, 0.0
  %v1514 = vmax.f32 %v1508, 0.0
  %v1515 = vmax.f32 %v1509, 0.0
  %v1516 = vmax.f32 %v1510, 0.0
  %v1517 = vmul.f32 %v1511, %v26
  %v1518 = vmul.f32 %v1512, %v30
  %v1519 = vmul.f32 %v1513, %v34
  %v1520 = vmul.f32 %v1514, %v38
  %v1521 = vmul.f32 %v1515, %v42
  %v1522 = vmul.f32 %v1516, %v46
  %v1523 = vpack.c.bf16 %v1517, %v1517
  %v1524 = vpack.c.bf16 %v1518, %v1518
  %v1525 = vpack.c.bf16 %v1519, %v1519
  %v1526 = vpack.c.bf16 %v1520, %v1520
  %v1527 = vpack.c.bf16 %v1521, %v1521
  %v1528 = vpack.c.bf16 %v1522, %v1522
  %v1535 = vunpack.c.l.b16 %v1523
  %v1536 = vunpack.c.l.b16 %v1524
  %v1537 = vunpack.c.l.b16 %v1525
  %v1538 = vunpack.c.l.b16 %v1526
  %v1539 = vunpack.c.l.b16 %v1527
  %v1540 = vunpack.c.l.b16 %v1528
  %v1541 = vpack.c.b16 %v1536, %v1535
  %v1542 = vpack.c.b16 %v1538, %v1537
  %v1543 = vpack.c.b16 %v1540, %v1539
  %1547 = vst [vmem:[#allocation2 + $0x4] sm:$0xff] %v1541
  %1548 = vst [vmem:[#allocation2 + $0xc] sm:$0xff] %v1542
  %1549 = vst [vmem:[#allocation2 + $0x14] sm:$0xff] %v1543
  %v1550 = vld [vmem:[#allocation2] sm:$0xff]
  %v1551 = vld [vmem:[#allocation2 + $0x8] sm:$0xff]
  %v1552 = vld [vmem:[#allocation2 + $0x10] sm:$0xff]
  %v1553 = vld [vmem:[#allocation2 + $0x18] sm:$0xf]
  %v1554 = vld [vmem:[#allocation2 + $0x4] sm:$0xff]
  %v1555 = vld [vmem:[#allocation2 + $0xc] sm:$0xff]
  %v1556 = vld [vmem:[#allocation2 + $0x14] sm:$0xff]
  %v1557 = vld [vmem:[#allocation2 + $0x4] sm:$0xff]
  %v1558 = vld [vmem:[#allocation2 + $0xc] sm:$0xff]
  %v1559 = vld [vmem:[#allocation2 + $0x14] sm:$0xff]
  %v1560 = vld [vmem:[#allocation2 + $0x1c] sm:$0xf]
  %v1565 = vunpack.c.l.b16 %v1550
  %v1566 = vunpack.c.h.b16 %v1550
  %v1567 = vunpack.c.l.b16 %v1551
  %v1568 = vunpack.c.h.b16 %v1551
  %v1569 = vunpack.c.l.b16 %v1552
  %v1570 = vunpack.c.h.b16 %v1552
  %v1571 = vunpack.c.l.b16 %v1553
  %v1572 = vpack.c.b16 %v1565, %v1565
  %v1573 = vpack.c.b16 %v1566, %v1566
  %v1574 = vpack.c.b16 %v1567, %v1567
  %v1575 = vpack.c.b16 %v1568, %v1568
  %v1576 = vpack.c.b16 %v1569, %v1569
  %v1577 = vpack.c.b16 %v1570, %v1570
  %v1578 = vpack.c.b16 %v1571, %v1571
  %1579 = vrot.lane.b32.xlu0 %v1572, 127
  %v1580 = vpop.permute.xlu0 %1579
  %1581 = vrot.lane.b32.xlu0 %v1573, 127
  %v1582 = vpop.permute.xlu0 %1581
  %1583 = vrot.lane.b32.xlu0 %v1574, 127
  %v1584 = vpop.permute.xlu0 %1583
  %1585 = vrot.lane.b32.xlu0 %v1575, 127
  %v1586 = vpop.permute.xlu0 %1585
  %1587 = vrot.lane.b32.xlu0 %v1576, 127
  %v1588 = vpop.permute.xlu0 %1587
  %1589 = vrot.lane.b32.xlu0 %v1577, 127
  %v1590 = vpop.permute.xlu0 %1589
  %1591 = vrot.lane.b32.xlu0 %v1578, 127
  %v1592 = vpop.permute.xlu0 %1591
  %v1593 = vsel %vm139, %v1580, %v1582
  %v1594 = vsel %vm139, %v1582, %v1584
  %v1595 = vsel %vm139, %v1584, %v1586
  %v1596 = vsel %vm139, %v1586, %v1588
  %v1597 = vsel %vm139, %v1588, %v1590
  %v1598 = vsel %vm139, %v1590, %v1592
  %1599 = vrot.lane.b32.xlu0 %v1572, 126
  %v1600 = vpop.permute.xlu0 %1599
  %1601 = vrot.lane.b32.xlu0 %v1573, 126
  %v1602 = vpop.permute.xlu0 %1601
  %1603 = vrot.lane.b32.xlu0 %v1574, 126
  %v1604 = vpop.permute.xlu0 %1603
  %1605 = vrot.lane.b32.xlu0 %v1575, 126
  %v1606 = vpop.permute.xlu0 %1605
  %1607 = vrot.lane.b32.xlu0 %v1576, 126
  %v1608 = vpop.permute.xlu0 %1607
  %1609 = vrot.lane.b32.xlu0 %v1577, 126
  %v1610 = vpop.permute.xlu0 %1609
  %1611 = vrot.lane.b32.xlu0 %v1578, 126
  %v1612 = vpop.permute.xlu0 %1611
  %v1613 = vsel %vm167, %v1600, %v1602
  %v1614 = vsel %vm167, %v1602, %v1604
  %v1615 = vsel %vm167, %v1604, %v1606
  %v1616 = vsel %vm167, %v1606, %v1608
  %v1617 = vsel %vm167, %v1608, %v1610
  %v1618 = vsel %vm167, %v1610, %v1612
  %1619 = vrot.lane.b32.xlu0 %v1572, 110
  %v1620 = vpop.permute.xlu0 %1619
  %1621 = vrot.lane.b32.xlu0 %v1573, 110
  %v1622 = vpop.permute.xlu0 %1621
  %1623 = vrot.lane.b32.xlu0 %v1574, 110
  %v1624 = vpop.permute.xlu0 %1623
  %1625 = vrot.lane.b32.xlu0 %v1575, 110
  %v1626 = vpop.permute.xlu0 %1625
  %1627 = vrot.lane.b32.xlu0 %v1576, 110
  %v1628 = vpop.permute.xlu0 %1627
  %1629 = vrot.lane.b32.xlu0 %v1577, 110
  %v1630 = vpop.permute.xlu0 %1629
  %1631 = vrot.lane.b32.xlu0 %v1578, 110
  %v1632 = vpop.permute.xlu0 %1631
  %v1633 = vsel %vm195, %v1620, %v1622
  %v1634 = vsel %vm195, %v1622, %v1624
  %v1635 = vsel %vm195, %v1624, %v1626
  %v1636 = vsel %vm195, %v1626, %v1628
  %v1637 = vsel %vm195, %v1628, %v1630
  %v1638 = vsel %vm195, %v1630, %v1632
  %v1642 = vunpack.c.l.b16 %v1554
  %v1643 = vunpack.c.h.b16 %v1554
  %v1644 = vunpack.c.l.b16 %v1555
  %v1645 = vunpack.c.h.b16 %v1555
  %v1646 = vunpack.c.l.b16 %v1556
  %v1647 = vunpack.c.h.b16 %v1556
  %v1648 = vpack.c.b16 %v1642, %v1642
  %v1649 = vpack.c.b16 %v1643, %v1643
  %v1650 = vpack.c.b16 %v1644, %v1644
  %v1651 = vpack.c.b16 %v1645, %v1645
  %v1652 = vpack.c.b16 %v1646, %v1646
  %v1653 = vpack.c.b16 %v1647, %v1647
  %1654 = vrot.lane.b32.xlu0 %v1648, 109
  %v1655 = vpop.permute.xlu0 %1654
  %1656 = vrot.lane.b32.xlu0 %v1649, 109
  %v1657 = vpop.permute.xlu0 %1656
  %1658 = vrot.lane.b32.xlu0 %v1650, 109
  %v1659 = vpop.permute.xlu0 %1658
  %1660 = vrot.lane.b32.xlu0 %v1651, 109
  %v1661 = vpop.permute.xlu0 %1660
  %1662 = vrot.lane.b32.xlu0 %v1652, 109
  %v1663 = vpop.permute.xlu0 %1662
  %1664 = vrot.lane.b32.xlu0 %v1653, 109
  %v1665 = vpop.permute.xlu0 %1664
  %v1666 = vsel %vm220, %v1655, %v1657
  %v1667 = vsel %vm220, %v1657, %v1659
  %v1668 = vsel %vm220, %v1659, %v1661
  %v1669 = vsel %vm220, %v1661, %v1663
  %v1670 = vsel %vm220, %v1663, %v1665
  %v1675 = vunpack.c.l.b16 %v1557
  %v1676 = vunpack.c.h.b16 %v1557
  %v1677 = vunpack.c.l.b16 %v1558
  %v1678 = vunpack.c.h.b16 %v1558
  %v1679 = vunpack.c.l.b16 %v1559
  %v1680 = vunpack.c.h.b16 %v1559
  %v1681 = vunpack.c.l.b16 %v1560
  %v1682 = vpack.c.b16 %v1675, %v1675
  %v1683 = vpack.c.b16 %v1676, %v1676
  %v1684 = vpack.c.b16 %v1677, %v1677
  %v1685 = vpack.c.b16 %v1678, %v1678
  %v1686 = vpack.c.b16 %v1679, %v1679
  %v1687 = vpack.c.b16 %v1680, %v1680
  %v1688 = vpack.c.b16 %v1681, %v1681
  %1689 = vrot.lane.b32.xlu0 %v1682, 108
  %v1690 = vpop.permute.xlu0 %1689
  %1691 = vrot.lane.b32.xlu0 %v1683, 108
  %v1692 = vpop.permute.xlu0 %1691
  %1693 = vrot.lane.b32.xlu0 %v1684, 108
  %v1694 = vpop.permute.xlu0 %1693
  %1695 = vrot.lane.b32.xlu0 %v1685, 108
  %v1696 = vpop.permute.xlu0 %1695
  %1697 = vrot.lane.b32.xlu0 %v1686, 108
  %v1698 = vpop.permute.xlu0 %1697
  %1699 = vrot.lane.b32.xlu0 %v1687, 108
  %v1700 = vpop.permute.xlu0 %1699
  %1701 = vrot.lane.b32.xlu0 %v1688, 108
  %v1702 = vpop.permute.xlu0 %1701
  %v1703 = vsel %vm254, %v1690, %v1692
  %v1704 = vsel %vm254, %v1692, %v1694
  %v1705 = vsel %vm254, %v1694, %v1696
  %v1706 = vsel %vm254, %v1696, %v1698
  %v1707 = vsel %vm254, %v1698, %v1700
  %v1708 = vsel %vm254, %v1700, %v1702
  %1709 = vrot.lane.b32.xlu0 %v1682, 92
  %v1710 = vpop.permute.xlu0 %1709
  %1711 = vrot.lane.b32.xlu0 %v1683, 92
  %v1712 = vpop.permute.xlu0 %1711
  %1713 = vrot.lane.b32.xlu0 %v1684, 92
  %v1714 = vpop.permute.xlu0 %1713
  %1715 = vrot.lane.b32.xlu0 %v1685, 92
  %v1716 = vpop.permute.xlu0 %1715
  %1717 = vrot.lane.b32.xlu0 %v1686, 92
  %v1718 = vpop.permute.xlu0 %1717
  %1719 = vrot.lane.b32.xlu0 %v1687, 92
  %v1720 = vpop.permute.xlu0 %1719
  %1721 = vrot.lane.b32.xlu0 %v1688, 92
  %v1722 = vpop.permute.xlu0 %1721
  %v1723 = vsel %vm282, %v1710, %v1712
  %v1724 = vsel %vm282, %v1712, %v1714
  %v1725 = vsel %vm282, %v1714, %v1716
  %v1726 = vsel %vm282, %v1716, %v1718
  %v1727 = vsel %vm282, %v1718, %v1720
  %v1728 = vsel %vm282, %v1720, %v1722
  %1729 = vrot.lane.b32.xlu0 %v1682, 91
  %v1730 = vpop.permute.xlu0 %1729
  %1731 = vrot.lane.b32.xlu0 %v1683, 91
  %v1732 = vpop.permute.xlu0 %1731
  %1733 = vrot.lane.b32.xlu0 %v1684, 91
  %v1734 = vpop.permute.xlu0 %1733
  %1735 = vrot.lane.b32.xlu0 %v1685, 91
  %v1736 = vpop.permute.xlu0 %1735
  %1737 = vrot.lane.b32.xlu0 %v1686, 91
  %v1738 = vpop.permute.xlu0 %1737
  %1739 = vrot.lane.b32.xlu0 %v1687, 91
  %v1740 = vpop.permute.xlu0 %1739
  %1741 = vrot.lane.b32.xlu0 %v1688, 91
  %v1742 = vpop.permute.xlu0 %1741
  %v1743 = vsel %vm310, %v1730, %v1732
  %v1744 = vsel %vm310, %v1732, %v1734
  %v1745 = vsel %vm310, %v1734, %v1736
  %v1746 = vsel %vm310, %v1736, %v1738
  %v1747 = vsel %vm310, %v1738, %v1740
  %v1748 = vsel %vm310, %v1740, %v1742
  %1749 = vrot.lane.b32.xlu0 %v1682, 90
  %v1750 = vpop.permute.xlu0 %1749
  %1751 = vrot.lane.b32.xlu0 %v1683, 90
  %v1752 = vpop.permute.xlu0 %1751
  %1753 = vrot.lane.b32.xlu0 %v1684, 90
  %v1754 = vpop.permute.xlu0 %1753
  %1755 = vrot.lane.b32.xlu0 %v1685, 90
  %v1756 = vpop.permute.xlu0 %1755
  %1757 = vrot.lane.b32.xlu0 %v1686, 90
  %v1758 = vpop.permute.xlu0 %1757
  %1759 = vrot.lane.b32.xlu0 %v1687, 90
  %v1760 = vpop.permute.xlu0 %1759
  %1761 = vrot.lane.b32.xlu0 %v1688, 90
  %v1762 = vpop.permute.xlu0 %1761
  %v1763 = vsel %vm331, %v1750, %v1752
  %v1764 = vsel %vm331, %v1752, %v1754
  %v1765 = vsel %vm331, %v1754, %v1756
  %v1766 = vsel %vm331, %v1756, %v1758
  %v1767 = vsel %vm331, %v1758, %v1760
  %v1768 = vsel %vm331, %v1760, %v1762
  %v1771 = vsel %vm360, %v1572, %v1593
  %v1774 = vsel %vm360, %v1573, %v1594
  %v1777 = vsel %vm360, %v1574, %v1595
  %v1780 = vsel %vm360, %v1575, %v1596
  %v1783 = vsel %vm360, %v1576, %v1597
  %v1786 = vsel %vm360, %v1577, %v1598
  %v1789 = vsel %vm360, %v1578, %v1592
  %v1792 = vsel %vm360, %v1613, %v1633
  %v1795 = vsel %vm360, %v1614, %v1634
  %v1798 = vsel %vm360, %v1615, %v1635
  %v1801 = vsel %vm360, %v1616, %v1636
  %v1804 = vsel %vm360, %v1617, %v1637
  %v1807 = vsel %vm360, %v1618, %v1638
  %v1810 = vsel %vm360, %v1612, %v1632
  %v1813 = vsel %vm360, %v1655, %v1690
  %v1816 = vsel %vm360, %v1666, %v1703
  %v1819 = vsel %vm360, %v1667, %v1704
  %v1822 = vsel %vm360, %v1668, %v1705
  %v1825 = vsel %vm360, %v1669, %v1706
  %v1828 = vsel %vm360, %v1670, %v1707
  %v1831 = vsel %vm360, %v1665, %v1708
  %v1834 = vsel %vm360, %v1710, %v1730
  %v1837 = vsel %vm360, %v1723, %v1743
  %v1840 = vsel %vm360, %v1724, %v1744
  %v1843 = vsel %vm360, %v1725, %v1745
  %v1846 = vsel %vm360, %v1726, %v1746
  %v1849 = vsel %vm360, %v1727, %v1747
  %v1852 = vsel %vm360, %v1728, %v1748
  %s1853 = scalar_lea.vmem %s3, 4
  %v1854 = vld [vmem:[%s1853] sm:$0xf]
  %1883 = vrot.lane.b32.xlu0 %v1771, 19
  %v1884 = vpop.permute.xlu0 %1883
  %1885 = vrot.lane.b32.xlu0 %v1774, 19
  %v1886 = vpop.permute.xlu0 %1885
  %1887 = vrot.lane.b32.xlu0 %v1777, 19
  %v1888 = vpop.permute.xlu0 %1887
  %1889 = vrot.lane.b32.xlu0 %v1780, 19
  %v1890 = vpop.permute.xlu0 %1889
  %1891 = vrot.lane.b32.xlu0 %v1783, 19
  %v1892 = vpop.permute.xlu0 %1891
  %1893 = vrot.lane.b32.xlu0 %v1786, 19
  %v1894 = vpop.permute.xlu0 %1893
  %1895 = vrot.lane.b32.xlu0 %v1789, 19
  %v1896 = vpop.permute.xlu0 %1895
  %1897 = vrot.lane.b32.xlu0 %v1792, 19
  %v1898 = vpop.permute.xlu0 %1897
  %1899 = vrot.lane.b32.xlu0 %v1795, 19
  %v1900 = vpop.permute.xlu0 %1899
  %1901 = vrot.lane.b32.xlu0 %v1798, 19
  %v1902 = vpop.permute.xlu0 %1901
  %1903 = vrot.lane.b32.xlu0 %v1801, 19
  %v1904 = vpop.permute.xlu0 %1903
  %1905 = vrot.lane.b32.xlu0 %v1804, 19
  %v1906 = vpop.permute.xlu0 %1905
  %1907 = vrot.lane.b32.xlu0 %v1807, 19
  %v1908 = vpop.permute.xlu0 %1907
  %1909 = vrot.lane.b32.xlu0 %v1810, 19
  %v1910 = vpop.permute.xlu0 %1909
  %1911 = vrot.lane.b32.xlu0 %v1813, 19
  %v1912 = vpop.permute.xlu0 %1911
  %1913 = vrot.lane.b32.xlu0 %v1816, 19
  %v1914 = vpop.permute.xlu0 %1913
  %1915 = vrot.lane.b32.xlu0 %v1819, 19
  %v1916 = vpop.permute.xlu0 %1915
  %1917 = vrot.lane.b32.xlu0 %v1822, 19
  %v1918 = vpop.permute.xlu0 %1917
  %1919 = vrot.lane.b32.xlu0 %v1825, 19
  %v1920 = vpop.permute.xlu0 %1919
  %1921 = vrot.lane.b32.xlu0 %v1828, 19
  %v1922 = vpop.permute.xlu0 %1921
  %1923 = vrot.lane.b32.xlu0 %v1831, 19
  %v1924 = vpop.permute.xlu0 %1923
  %1925 = vrot.lane.b32.xlu0 %v1834, 19
  %v1926 = vpop.permute.xlu0 %1925
  %1927 = vrot.lane.b32.xlu0 %v1837, 19
  %v1928 = vpop.permute.xlu0 %1927
  %1929 = vrot.lane.b32.xlu0 %v1840, 19
  %v1930 = vpop.permute.xlu0 %1929
  %1931 = vrot.lane.b32.xlu0 %v1843, 19
  %v1932 = vpop.permute.xlu0 %1931
  %1933 = vrot.lane.b32.xlu0 %v1846, 19
  %v1934 = vpop.permute.xlu0 %1933
  %1935 = vrot.lane.b32.xlu0 %v1849, 19
  %v1936 = vpop.permute.xlu0 %1935
  %1937 = vrot.lane.b32.xlu0 %v1852, 19
  %v1938 = vpop.permute.xlu0 %1937
  %1939 = vrot.lane.b32.xlu0 %v1750, 19
  %v1940 = vpop.permute.xlu0 %1939
  %1941 = vrot.lane.b32.xlu0 %v1763, 19
  %v1942 = vpop.permute.xlu0 %1941
  %1943 = vrot.lane.b32.xlu0 %v1764, 19
  %v1944 = vpop.permute.xlu0 %1943
  %1945 = vrot.lane.b32.xlu0 %v1765, 19
  %v1946 = vpop.permute.xlu0 %1945
  %1947 = vrot.lane.b32.xlu0 %v1766, 19
  %v1948 = vpop.permute.xlu0 %1947
  %1949 = vrot.lane.b32.xlu0 %v1767, 19
  %v1950 = vpop.permute.xlu0 %1949
  %1951 = vrot.lane.b32.xlu0 %v1768, 19
  %v1952 = vpop.permute.xlu0 %1951
  %v1953 = vsel %vm502, %v1884, %v1886
  %v1954 = vsel %vm502, %v1886, %v1888
  %v1955 = vsel %vm502, %v1888, %v1890
  %v1956 = vsel %vm502, %v1890, %v1892
  %v1957 = vsel %vm502, %v1892, %v1894
  %v1958 = vsel %vm502, %v1894, %v1896
  %v1959 = vsel %vm502, %v1898, %v1900
  %v1960 = vsel %vm502, %v1900, %v1902
  %v1961 = vsel %vm502, %v1902, %v1904
  %v1962 = vsel %vm502, %v1904, %v1906
  %v1963 = vsel %vm502, %v1906, %v1908
  %v1964 = vsel %vm502, %v1908, %v1910
  %v1965 = vsel %vm502, %v1912, %v1914
  %v1966 = vsel %vm502, %v1914, %v1916
  %v1967 = vsel %vm502, %v1916, %v1918
  %v1968 = vsel %vm502, %v1918, %v1920
  %v1969 = vsel %vm502, %v1920, %v1922
  %v1970 = vsel %vm502, %v1922, %v1924
  %v1971 = vsel %vm502, %v1926, %v1928
  %v1972 = vsel %vm502, %v1928, %v1930
  %v1973 = vsel %vm502, %v1930, %v1932
  %v1974 = vsel %vm502, %v1932, %v1934
  %v1975 = vsel %vm502, %v1934, %v1936
  %v1976 = vsel %vm502, %v1936, %v1938
  %v1977 = vsel %vm502, %v1940, %v1942
  %v1978 = vsel %vm502, %v1942, %v1944
  %v1979 = vsel %vm502, %v1944, %v1946
  %v1980 = vsel %vm502, %v1946, %v1948
  %v1981 = vsel %vm502, %v1948, %v1950
  %v1982 = vsel %vm502, %v1950, %v1952
  %v2008 = vsel %vm1304, %v1854, 0
  %v2011 = vsel %vm360, %v1977, 0
  %v2014 = vsel %vm360, %v1978, 0
  %v2017 = vsel %vm360, %v1979, 0
  %v2020 = vsel %vm360, %v1980, 0
  %v2023 = vsel %vm360, %v1981, 0
  %v2026 = vsel %vm360, %v1982, 0
  %2028 = vmatprep.subr.bf16.mxu0 %v1954
  %2029 = vmatpush1.bf16.msra.mxu0 %v1953
  %2030 = vmatprep.subr.bf16.mxu0 %v1960
  %2031 = vmatpush1.bf16.msra.mxu0 %v1959
  %2032 = vmatprep.subr.bf16.mxu0 %v1966
  %2033 = vmatpush1.bf16.msra.mxu0 %v1965
  %2034 = vmatprep.subr.bf16.mxu0 %v1972
  %2035 = vmatpush1.bf16.msra.mxu0 %v1971
  %2036 = vmatprep.subr.bf16.mxu0 %v2014
  %2037 = vmatpush1.bf16.msra.mxu0 %v2011
  %2038 = vmatprep.subr.bf16.mxu0 0
  %2039 = vmatpush1.bf16.msra.mxu0 0
  %2040 = vmatprep.subr.bf16.mxu0 0
  %2041 = vmatpush1.bf16.msra.mxu0 0
  %2042 = vmatprep.subr.bf16.mxu0 0
  %2043 = vmatpush1.bf16.msra.mxu0 0
  %2044 = vmatprep.subr.bf16.mxu0 0
  %2045 = vmatpush1.bf16.msra.mxu0 0
  %2046 = vmatprep.subr.bf16.mxu0 0
  %2047 = vmatpush1.bf16.msra.mxu0 0
  %2048 = vmatprep.subr.bf16.mxu0 0
  %2049 = vmatpush1.bf16.msra.mxu0 0
  %2050 = vmatprep.subr.bf16.mxu0 0
  %2051 = vmatpush1.bf16.msra.mxu0 0
  %2052 = vmatprep.subr.bf16.mxu0 0
  %2053 = vmatpush1.bf16.msra.mxu0 0
  %2054 = vmatprep.subr.bf16.mxu0 0
  %2055 = vmatpush1.bf16.msra.mxu0 0
  %2056 = vmatprep.subr.bf16.mxu0 0
  %2057 = vmatpush1.bf16.msra.mxu0 0
  %2058 = vmatprep.subr.bf16.mxu0 0
  %2059 = vmatpush1.bf16.msra.mxu0 0
  %2060 = vmatprep.mubr.bf16.mxu0 0
  %2061 = vmatmul.mubr.bf16.gmra.mrb[0].mxu0 %v2008
  %v2062 = vpop.f32.mrb[0].mxu0
  %v2063 = vadd.f32 0.0, %v2062
  %v2064 = vpop.f32.mrb[0].mxu0
  %v2065 = vadd.f32 0.0, %v2064
  %v2066 = vpop.f32.mrb[0].mxu0
  %v2067 = vpop.f32.mrb[0].mxu0
  %2068 = vdwg.mxu0
  %2069 = vmatprep.subr.bf16.mxu0 %v1956
  %2070 = vmatpush1.bf16.msra.mxu0 %v1955
  %2071 = vmatprep.subr.bf16.mxu0 %v1962
  %2072 = vmatpush1.bf16.msra.mxu0 %v1961
  %2073 = vmatprep.subr.bf16.mxu0 %v1968
  %2074 = vmatpush1.bf16.msra.mxu0 %v1967
  %2075 = vmatprep.subr.bf16.mxu0 %v1974
  %2076 = vmatpush1.bf16.msra.mxu0 %v1973
  %2077 = vmatprep.subr.bf16.mxu0 %v2020
  %2078 = vmatpush1.bf16.msra.mxu0 %v2017
  %2079 = vmatprep.subr.bf16.mxu0 0
  %2080 = vmatpush1.bf16.msra.mxu0 0
  %2081 = vmatprep.subr.bf16.mxu0 0
  %2082 = vmatpush1.bf16.msra.mxu0 0
  %2083 = vmatprep.subr.bf16.mxu0 0
  %2084 = vmatpush1.bf16.msra.mxu0 0
  %2085 = vmatprep.subr.bf16.mxu0 0
  %2086 = vmatpush1.bf16.msra.mxu0 0
  %2087 = vmatprep.subr.bf16.mxu0 0
  %2088 = vmatpush1.bf16.msra.mxu0 0
  %2089 = vmatprep.subr.bf16.mxu0 0
  %2090 = vmatpush1.bf16.msra.mxu0 0
  %2091 = vmatprep.subr.bf16.mxu0 0
  %2092 = vmatpush1.bf16.msra.mxu0 0
  %2093 = vmatprep.subr.bf16.mxu0 0
  %2094 = vmatpush1.bf16.msra.mxu0 0
  %2095 = vmatprep.subr.bf16.mxu0 0
  %2096 = vmatpush1.bf16.msra.mxu0 0
  %2097 = vmatprep.subr.bf16.mxu0 0
  %2098 = vmatpush1.bf16.msra.mxu0 0
  %2099 = vmatprep.subr.bf16.mxu0 0
  %2100 = vmatpush1.bf16.msra.mxu0 0
  %2101 = vmatprep.mubr.bf16.mxu0 0
  %2102 = vmatmul.mubr.bf16.gmra.mrb[0].mxu0 %v2008
  %v2103 = vpop.f32.mrb[0].mxu0
  %v2104 = vadd.f32 0.0, %v2103
  %v2105 = vpop.f32.mrb[0].mxu0
  %v2106 = vadd.f32 0.0, %v2105
  %v2107 = vpop.f32.mrb[0].mxu0
  %v2108 = vpop.f32.mrb[0].mxu0
  %2109 = vdwg.mxu0
  %2110 = vmatprep.subr.bf16.mxu0 %v1958
  %2111 = vmatpush1.bf16.msra.mxu0 %v1957
  %2112 = vmatprep.subr.bf16.mxu0 %v1964
  %2113 = vmatpush1.bf16.msra.mxu0 %v1963
  %2114 = vmatprep.subr.bf16.mxu0 %v1970
  %2115 = vmatpush1.bf16.msra.mxu0 %v1969
  %2116 = vmatprep.subr.bf16.mxu0 %v1976
  %2117 = vmatpush1.bf16.msra.mxu0 %v1975
  %2118 = vmatprep.subr.bf16.mxu0 %v2026
  %2119 = vmatpush1.bf16.msra.mxu0 %v2023
  %2120 = vmatprep.subr.bf16.mxu0 0
  %2121 = vmatpush1.bf16.msra.mxu0 0
  %2122 = vmatprep.subr.bf16.mxu0 0
  %2123 = vmatpush1.bf16.msra.mxu0 0
  %2124 = vmatprep.subr.bf16.mxu0 0
  %2125 = vmatpush1.bf16.msra.mxu0 0
  %2126 = vmatprep.subr.bf16.mxu0 0
  %2127 = vmatpush1.bf16.msra.mxu0 0
  %2128 = vmatprep.subr.bf16.mxu0 0
  %2129 = vmatpush1.bf16.msra.mxu0 0
  %2130 = vmatprep.subr.bf16.mxu0 0
  %2131 = vmatpush1.bf16.msra.mxu0 0
  %2132 = vmatprep.subr.bf16.mxu0 0
  %2133 = vmatpush1.bf16.msra.mxu0 0
  %2134 = vmatprep.subr.bf16.mxu0 0
  %2135 = vmatpush1.bf16.msra.mxu0 0
  %2136 = vmatprep.subr.bf16.mxu0 0
  %2137 = vmatpush1.bf16.msra.mxu0 0
  %2138 = vmatprep.subr.bf16.mxu0 0
  %2139 = vmatpush1.bf16.msra.mxu0 0
  %2140 = vmatprep.subr.bf16.mxu0 0
  %2141 = vmatpush1.bf16.msra.mxu0 0
  %2142 = vmatprep.mubr.bf16.mxu0 0
  %2143 = vmatmul.mubr.bf16.gmra.mrb[0].mxu0 %v2008
  %v2144 = vpop.f32.mrb[0].mxu0
  %v2145 = vadd.f32 0.0, %v2144
  %v2146 = vpop.f32.mrb[0].mxu0
  %v2147 = vadd.f32 0.0, %v2146
  %v2148 = vpop.f32.mrb[0].mxu0
  %v2149 = vpop.f32.mrb[0].mxu0
  %2150 = vdwg.mxu0
  %v2151 = vld [vmem:[%s4] sm:$0xff]
  %v2152 = vmul.f32 %v2063, %v26
  %v2153 = vmul.f32 %v2065, %v30
  %v2154 = vmul.f32 %v2104, %v34
  %v2155 = vmul.f32 %v2106, %v38
  %v2156 = vmul.f32 %v2145, %v42
  %v2157 = vmul.f32 %v2147, %v46
  %v2158 = vadd.f32 %v2152, %v2153
  %v2159 = vadd.f32 %v2158, %v2154
  %v2160 = vadd.f32 %v2159, %v2155
  %v2161 = vadd.f32 %v2160, %v2156
  %v2162 = vadd.f32 %v2161, %v2157
  %2163 = vadd.xlane.f32.xlu0 %v2162
  %v2164 = vpop.xlane.xlu0 %2163
  %v2165 = vmul.f32 %v2164, 0.001953125
  %v2166 = vmul.f32 %v2152, %v2063
  %v2167 = vmul.f32 %v2153, %v2065
  %v2168 = vmul.f32 %v2154, %v2104
  %v2169 = vmul.f32 %v2155, %v2106
  %v2170 = vmul.f32 %v2156, %v2145
  %v2171 = vmul.f32 %v2157, %v2147
  %v2172 = vadd.f32 %v2166, %v2167
  %v2173 = vadd.f32 %v2172, %v2168
  %v2174 = vadd.f32 %v2173, %v2169
  %v2175 = vadd.f32 %v2174, %v2170
  %v2176 = vadd.f32 %v2175, %v2171
  %2177 = vadd.xlane.f32.xlu0 %v2176
  %v2178 = vpop.xlane.xlu0 %2177
  %v2179 = vmul.f32 %v2178, 0.001953125
  %v2180 = vmul.f32 %v2165, %v2165
  %v2181 = vsub.f32 %v2179, %v2180
  %v2182 = vadd.f32 %v2181, 1e-05
  %v2183 = vrsqrt.pop %v2182
  %v2184 = vmul.f32 %v2151, %v2183
  %2186 = vset.pattern.permute.xlu0 4
  %2187 = vperm.xlu0 %2186, %v2184
  %v2188 = vpop.permute.xlu0 %2187
  %v2190 = vmul.f32 %v2063, %v2188
  %v2191 = vmul.f32 %v2065, %v2188
  %v2192 = vmul.f32 %v2104, %v2188
  %v2193 = vmul.f32 %v2106, %v2188
  %v2194 = vmul.f32 %v2145, %v2188
  %v2195 = vmul.f32 %v2147, %v2188
  %v2196 = vmul.f32 %v2165, %v2184
  %2198 = vrot.lane.b32.xlu0 %v2196, 1
  %v2199 = vpop.permute.xlu0 %2198
  %v2201 = vsub.f32 %v2151, %v2199
  %2203 = vset.pattern.permute.xlu0 5
  %2204 = vperm.xlu0 %2203, %v2201
  %v2205 = vpop.permute.xlu0 %2204
  %v2207 = vadd.f32 %v2190, %v2205
  %v2208 = vadd.f32 %v2191, %v2205
  %v2209 = vadd.f32 %v2192, %v2205
  %v2210 = vadd.f32 %v2193, %v2205
  %v2211 = vadd.f32 %v2194, %v2205
  %v2212 = vadd.f32 %v2195, %v2205
  %v2213 = vmax.f32 %v2207, 0.0
  %v2214 = vmax.f32 %v2208, 0.0
  %v2215 = vmax.f32 %v2209, 0.0
  %v2216 = vmax.f32 %v2210, 0.0
  %v2217 = vmax.f32 %v2211, 0.0
  %v2218 = vmax.f32 %v2212, 0.0
  %v2219 = vmul.f32 %v2213, %v26
  %v2220 = vmul.f32 %v2214, %v30
  %v2221 = vmul.f32 %v2215, %v34
  %v2222 = vmul.f32 %v2216, %v38
  %v2223 = vmul.f32 %v2217, %v42
  %v2224 = vmul.f32 %v2218, %v46
  %v2225 = vpack.c.bf16 %v2219, %v2219
  %v2226 = vpack.c.bf16 %v2220, %v2220
  %v2227 = vpack.c.bf16 %v2221, %v2221
  %v2228 = vpack.c.bf16 %v2222, %v2222
  %v2229 = vpack.c.bf16 %v2223, %v2223
  %v2230 = vpack.c.bf16 %v2224, %v2224
  %v2237 = vunpack.c.l.b16 %v2225
  %v2238 = vunpack.c.l.b16 %v2226
  %v2239 = vunpack.c.l.b16 %v2227
  %v2240 = vunpack.c.l.b16 %v2228
  %v2241 = vunpack.c.l.b16 %v2229
  %v2242 = vunpack.c.l.b16 %v2230
  %v2243 = vpack.c.b16 %v2238, %v2237
  %v2244 = vpack.c.b16 %v2240, %v2239
  %v2245 = vpack.c.b16 %v2242, %v2241
  %2249 = vst [vmem:[#allocation2 + $0x4] sm:$0xff] %v2243
  %2250 = vst [vmem:[#allocation2 + $0xc] sm:$0xff] %v2244
  %2251 = vst [vmem:[#allocation2 + $0x14] sm:$0xff] %v2245
  %v2252 = vld [vmem:[#allocation2] sm:$0xff]
  %v2253 = vld [vmem:[#allocation2 + $0x8] sm:$0xff]
  %v2254 = vld [vmem:[#allocation2 + $0x10] sm:$0xff]
  %v2255 = vld [vmem:[#allocation2 + $0x18] sm:$0xf]
  %v2256 = vld [vmem:[#allocation2 + $0x4] sm:$0xff]
  %v2257 = vld [vmem:[#allocation2 + $0xc] sm:$0xff]
  %v2258 = vld [vmem:[#allocation2 + $0x14] sm:$0xff]
  %v2259 = vld [vmem:[#allocation2 + $0x4] sm:$0xff]
  %v2260 = vld [vmem:[#allocation2 + $0xc] sm:$0xff]
  %v2261 = vld [vmem:[#allocation2 + $0x14] sm:$0xff]
  %v2262 = vld [vmem:[#allocation2 + $0x1c] sm:$0xf]
  %v2267 = vunpack.c.l.b16 %v2252
  %v2268 = vunpack.c.h.b16 %v2252
  %v2269 = vunpack.c.l.b16 %v2253
  %v2270 = vunpack.c.h.b16 %v2253
  %v2271 = vunpack.c.l.b16 %v2254
  %v2272 = vunpack.c.h.b16 %v2254
  %v2273 = vunpack.c.l.b16 %v2255
  %v2274 = vpack.c.b16 %v2267, %v2267
  %v2275 = vpack.c.b16 %v2268, %v2268
  %v2276 = vpack.c.b16 %v2269, %v2269
  %v2277 = vpack.c.b16 %v2270, %v2270
  %v2278 = vpack.c.b16 %v2271, %v2271
  %v2279 = vpack.c.b16 %v2272, %v2272
  %v2280 = vpack.c.b16 %v2273, %v2273
  %2281 = vrot.lane.b32.xlu0 %v2274, 127
  %v2282 = vpop.permute.xlu0 %2281
  %2283 = vrot.lane.b32.xlu0 %v2275, 127
  %v2284 = vpop.permute.xlu0 %2283
  %2285 = vrot.lane.b32.xlu0 %v2276, 127
  %v2286 = vpop.permute.xlu0 %2285
  %2287 = vrot.lane.b32.xlu0 %v2277, 127
  %v2288 = vpop.permute.xlu0 %2287
  %2289 = vrot.lane.b32.xlu0 %v2278, 127
  %v2290 = vpop.permute.xlu0 %2289
  %2291 = vrot.lane.b32.xlu0 %v2279, 127
  %v2292 = vpop.permute.xlu0 %2291
  %2293 = vrot.lane.b32.xlu0 %v2280, 127
  %v2294 = vpop.permute.xlu0 %2293
  %v2295 = vsel %vm139, %v2282, %v2284
  %v2296 = vsel %vm139, %v2284, %v2286
  %v2297 = vsel %vm139, %v2286, %v2288
  %v2298 = vsel %vm139, %v2288, %v2290
  %v2299 = vsel %vm139, %v2290, %v2292
  %v2300 = vsel %vm139, %v2292, %v2294
  %2301 = vrot.lane.b32.xlu0 %v2274, 126
  %v2302 = vpop.permute.xlu0 %2301
  %2303 = vrot.lane.b32.xlu0 %v2275, 126
  %v2304 = vpop.permute.xlu0 %2303
  %2305 = vrot.lane.b32.xlu0 %v2276, 126
  %v2306 = vpop.permute.xlu0 %2305
  %2307 = vrot.lane.b32.xlu0 %v2277, 126
  %v2308 = vpop.permute.xlu0 %2307
  %2309 = vrot.lane.b32.xlu0 %v2278, 126
  %v2310 = vpop.permute.xlu0 %2309
  %2311 = vrot.lane.b32.xlu0 %v2279, 126
  %v2312 = vpop.permute.xlu0 %2311
  %2313 = vrot.lane.b32.xlu0 %v2280, 126
  %v2314 = vpop.permute.xlu0 %2313
  %v2315 = vsel %vm167, %v2302, %v2304
  %v2316 = vsel %vm167, %v2304, %v2306
  %v2317 = vsel %vm167, %v2306, %v2308
  %v2318 = vsel %vm167, %v2308, %v2310
  %v2319 = vsel %vm167, %v2310, %v2312
  %v2320 = vsel %vm167, %v2312, %v2314
  %2321 = vrot.lane.b32.xlu0 %v2274, 110
  %v2322 = vpop.permute.xlu0 %2321
  %2323 = vrot.lane.b32.xlu0 %v2275, 110
  %v2324 = vpop.permute.xlu0 %2323
  %2325 = vrot.lane.b32.xlu0 %v2276, 110
  %v2326 = vpop.permute.xlu0 %2325
  %2327 = vrot.lane.b32.xlu0 %v2277, 110
  %v2328 = vpop.permute.xlu0 %2327
  %2329 = vrot.lane.b32.xlu0 %v2278, 110
  %v2330 = vpop.permute.xlu0 %2329
  %2331 = vrot.lane.b32.xlu0 %v2279, 110
  %v2332 = vpop.permute.xlu0 %2331
  %2333 = vrot.lane.b32.xlu0 %v2280, 110
  %v2334 = vpop.permute.xlu0 %2333
  %v2335 = vsel %vm195, %v2322, %v2324
  %v2336 = vsel %vm195, %v2324, %v2326
  %v2337 = vsel %vm195, %v2326, %v2328
  %v2338 = vsel %vm195, %v2328, %v2330
  %v2339 = vsel %vm195, %v2330, %v2332
  %v2340 = vsel %vm195, %v2332, %v2334
  %v2344 = vunpack.c.l.b16 %v2256
  %v2345 = vunpack.c.h.b16 %v2256
  %v2346 = vunpack.c.l.b16 %v2257
  %v2347 = vunpack.c.h.b16 %v2257
  %v2348 = vunpack.c.l.b16 %v2258
  %v2349 = vunpack.c.h.b16 %v2258
  %v2350 = vpack.c.b16 %v2344, %v2344
  %v2351 = vpack.c.b16 %v2345, %v2345
  %v2352 = vpack.c.b16 %v2346, %v2346
  %v2353 = vpack.c.b16 %v2347, %v2347
  %v2354 = vpack.c.b16 %v2348, %v2348
  %v2355 = vpack.c.b16 %v2349, %v2349
  %2356 = vrot.lane.b32.xlu0 %v2350, 109
  %v2357 = vpop.permute.xlu0 %2356
  %2358 = vrot.lane.b32.xlu0 %v2351, 109
  %v2359 = vpop.permute.xlu0 %2358
  %2360 = vrot.lane.b32.xlu0 %v2352, 109
  %v2361 = vpop.permute.xlu0 %2360
  %2362 = vrot.lane.b32.xlu0 %v2353, 109
  %v2363 = vpop.permute.xlu0 %2362
  %2364 = vrot.lane.b32.xlu0 %v2354, 109
  %v2365 = vpop.permute.xlu0 %2364
  %2366 = vrot.lane.b32.xlu0 %v2355, 109
  %v2367 = vpop.permute.xlu0 %2366
  %v2368 = vsel %vm220, %v2357, %v2359
  %v2369 = vsel %vm220, %v2359, %v2361
  %v2370 = vsel %vm220, %v2361, %v2363
  %v2371 = vsel %vm220, %v2363, %v2365
  %v2372 = vsel %vm220, %v2365, %v2367
  %v2377 = vunpack.c.l.b16 %v2259
  %v2378 = vunpack.c.h.b16 %v2259
  %v2379 = vunpack.c.l.b16 %v2260
  %v2380 = vunpack.c.h.b16 %v2260
  %v2381 = vunpack.c.l.b16 %v2261
  %v2382 = vunpack.c.h.b16 %v2261
  %v2383 = vunpack.c.l.b16 %v2262
  %v2384 = vpack.c.b16 %v2377, %v2377
  %v2385 = vpack.c.b16 %v2378, %v2378
  %v2386 = vpack.c.b16 %v2379, %v2379
  %v2387 = vpack.c.b16 %v2380, %v2380
  %v2388 = vpack.c.b16 %v2381, %v2381
  %v2389 = vpack.c.b16 %v2382, %v2382
  %v2390 = vpack.c.b16 %v2383, %v2383
  %2391 = vrot.lane.b32.xlu0 %v2384, 108
  %v2392 = vpop.permute.xlu0 %2391
  %2393 = vrot.lane.b32.xlu0 %v2385, 108
  %v2394 = vpop.permute.xlu0 %2393
  %2395 = vrot.lane.b32.xlu0 %v2386, 108
  %v2396 = vpop.permute.xlu0 %2395
  %2397 = vrot.lane.b32.xlu0 %v2387, 108
  %v2398 = vpop.permute.xlu0 %2397
  %2399 = vrot.lane.b32.xlu0 %v2388, 108
  %v2400 = vpop.permute.xlu0 %2399
  %2401 = vrot.lane.b32.xlu0 %v2389, 108
  %v2402 = vpop.permute.xlu0 %2401
  %2403 = vrot.lane.b32.xlu0 %v2390, 108
  %v2404 = vpop.permute.xlu0 %2403
  %v2405 = vsel %vm254, %v2392, %v2394
  %v2406 = vsel %vm254, %v2394, %v2396
  %v2407 = vsel %vm254, %v2396, %v2398
  %v2408 = vsel %vm254, %v2398, %v2400
  %v2409 = vsel %vm254, %v2400, %v2402
  %v2410 = vsel %vm254, %v2402, %v2404
  %2411 = vrot.lane.b32.xlu0 %v2384, 92
  %v2412 = vpop.permute.xlu0 %2411
  %2413 = vrot.lane.b32.xlu0 %v2385, 92
  %v2414 = vpop.permute.xlu0 %2413
  %2415 = vrot.lane.b32.xlu0 %v2386, 92
  %v2416 = vpop.permute.xlu0 %2415
  %2417 = vrot.lane.b32.xlu0 %v2387, 92
  %v2418 = vpop.permute.xlu0 %2417
  %2419 = vrot.lane.b32.xlu0 %v2388, 92
  %v2420 = vpop.permute.xlu0 %2419
  %2421 = vrot.lane.b32.xlu0 %v2389, 92
  %v2422 = vpop.permute.xlu0 %2421
  %2423 = vrot.lane.b32.xlu0 %v2390, 92
  %v2424 = vpop.permute.xlu0 %2423
  %v2425 = vsel %vm282, %v2412, %v2414
  %v2426 = vsel %vm282, %v2414, %v2416
  %v2427 = vsel %vm282, %v2416, %v2418
  %v2428 = vsel %vm282, %v2418, %v2420
  %v2429 = vsel %vm282, %v2420, %v2422
  %v2430 = vsel %vm282, %v2422, %v2424
  %2431 = vrot.lane.b32.xlu0 %v2384, 91
  %v2432 = vpop.permute.xlu0 %2431
  %2433 = vrot.lane.b32.xlu0 %v2385, 91
  %v2434 = vpop.permute.xlu0 %2433
  %2435 = vrot.lane.b32.xlu0 %v2386, 91
  %v2436 = vpop.permute.xlu0 %2435
  %2437 = vrot.lane.b32.xlu0 %v2387, 91
  %v2438 = vpop.permute.xlu0 %2437
  %2439 = vrot.lane.b32.xlu0 %v2388, 91
  %v2440 = vpop.permute.xlu0 %2439
  %2441 = vrot.lane.b32.xlu0 %v2389, 91
  %v2442 = vpop.permute.xlu0 %2441
  %2443 = vrot.lane.b32.xlu0 %v2390, 91
  %v2444 = vpop.permute.xlu0 %2443
  %v2445 = vsel %vm310, %v2432, %v2434
  %v2446 = vsel %vm310, %v2434, %v2436
  %v2447 = vsel %vm310, %v2436, %v2438
  %v2448 = vsel %vm310, %v2438, %v2440
  %v2449 = vsel %vm310, %v2440, %v2442
  %v2450 = vsel %vm310, %v2442, %v2444
  %2451 = vrot.lane.b32.xlu0 %v2384, 90
  %v2452 = vpop.permute.xlu0 %2451
  %2453 = vrot.lane.b32.xlu0 %v2385, 90
  %v2454 = vpop.permute.xlu0 %2453
  %2455 = vrot.lane.b32.xlu0 %v2386, 90
  %v2456 = vpop.permute.xlu0 %2455
  %2457 = vrot.lane.b32.xlu0 %v2387, 90
  %v2458 = vpop.permute.xlu0 %2457
  %2459 = vrot.lane.b32.xlu0 %v2388, 90
  %v2460 = vpop.permute.xlu0 %2459
  %2461 = vrot.lane.b32.xlu0 %v2389, 90
  %v2462 = vpop.permute.xlu0 %2461
  %2463 = vrot.lane.b32.xlu0 %v2390, 90
  %v2464 = vpop.permute.xlu0 %2463
  %v2465 = vsel %vm331, %v2452, %v2454
  %v2466 = vsel %vm331, %v2454, %v2456
  %v2467 = vsel %vm331, %v2456, %v2458
  %v2468 = vsel %vm331, %v2458, %v2460
  %v2469 = vsel %vm331, %v2460, %v2462
  %v2470 = vsel %vm331, %v2462, %v2464
  %v2473 = vsel %vm360, %v2274, %v2295
  %v2476 = vsel %vm360, %v2275, %v2296
  %v2479 = vsel %vm360, %v2276, %v2297
  %v2482 = vsel %vm360, %v2277, %v2298
  %v2485 = vsel %vm360, %v2278, %v2299
  %v2488 = vsel %vm360, %v2279, %v2300
  %v2491 = vsel %vm360, %v2280, %v2294
  %v2494 = vsel %vm360, %v2315, %v2335
  %v2497 = vsel %vm360, %v2316, %v2336
  %v2500 = vsel %vm360, %v2317, %v2337
  %v2503 = vsel %vm360, %v2318, %v2338
  %v2506 = vsel %vm360, %v2319, %v2339
  %v2509 = vsel %vm360, %v2320, %v2340
  %v2512 = vsel %vm360, %v2314, %v2334
  %v2515 = vsel %vm360, %v2357, %v2392
  %v2518 = vsel %vm360, %v2368, %v2405
  %v2521 = vsel %vm360, %v2369, %v2406
  %v2524 = vsel %vm360, %v2370, %v2407
  %v2527 = vsel %vm360, %v2371, %v2408
  %v2530 = vsel %vm360, %v2372, %v2409
  %v2533 = vsel %vm360, %v2367, %v2410
  %v2536 = vsel %vm360, %v2412, %v2432
  %v2539 = vsel %vm360, %v2425, %v2445
  %v2542 = vsel %vm360, %v2426, %v2446
  %v2545 = vsel %vm360, %v2427, %v2447
  %v2548 = vsel %vm360, %v2428, %v2448
  %v2551 = vsel %vm360, %v2429, %v2449
  %v2554 = vsel %vm360, %v2430, %v2450
  %s2555 = scalar_lea.vmem %s3, 8
  %v2556 = vld [vmem:[%s2555] sm:$0xf]
  %2585 = vrot.lane.b32.xlu0 %v2473, 19
  %v2586 = vpop.permute.xlu0 %2585
  %2587 = vrot.lane.b32.xlu0 %v2476, 19
  %v2588 = vpop.permute.xlu0 %2587
  %2589 = vrot.lane.b32.xlu0 %v2479, 19
  %v2590 = vpop.permute.xlu0 %2589
  %2591 = vrot.lane.b32.xlu0 %v2482, 19
  %v2592 = vpop.permute.xlu0 %2591
  %2593 = vrot.lane.b32.xlu0 %v2485, 19
  %v2594 = vpop.permute.xlu0 %2593
  %2595 = vrot.lane.b32.xlu0 %v2488, 19
  %v2596 = vpop.permute.xlu0 %2595
  %2597 = vrot.lane.b32.xlu0 %v2491, 19
  %v2598 = vpop.permute.xlu0 %2597
  %2599 = vrot.lane.b32.xlu0 %v2494, 19
  %v2600 = vpop.permute.xlu0 %2599
  %2601 = vrot.lane.b32.xlu0 %v2497, 19
  %v2602 = vpop.permute.xlu0 %2601
  %2603 = vrot.lane.b32.xlu0 %v2500, 19
  %v2604 = vpop.permute.xlu0 %2603
  %2605 = vrot.lane.b32.xlu0 %v2503, 19
  %v2606 = vpop.permute.xlu0 %2605
  %2607 = vrot.lane.b32.xlu0 %v2506, 19
  %v2608 = vpop.permute.xlu0 %2607
  %2609 = vrot.lane.b32.xlu0 %v2509, 19
  %v2610 = vpop.permute.xlu0 %2609
  %2611 = vrot.lane.b32.xlu0 %v2512, 19
  %v2612 = vpop.permute.xlu0 %2611
  %2613 = vrot.lane.b32.xlu0 %v2515, 19
  %v2614 = vpop.permute.xlu0 %2613
  %2615 = vrot.lane.b32.xlu0 %v2518, 19
  %v2616 = vpop.permute.xlu0 %2615
  %2617 = vrot.lane.b32.xlu0 %v2521, 19
  %v2618 = vpop.permute.xlu0 %2617
  %2619 = vrot.lane.b32.xlu0 %v2524, 19
  %v2620 = vpop.permute.xlu0 %2619
  %2621 = vrot.lane.b32.xlu0 %v2527, 19
  %v2622 = vpop.permute.xlu0 %2621
  %2623 = vrot.lane.b32.xlu0 %v2530, 19
  %v2624 = vpop.permute.xlu0 %2623
  %2625 = vrot.lane.b32.xlu0 %v2533, 19
  %v2626 = vpop.permute.xlu0 %2625
  %2627 = vrot.lane.b32.xlu0 %v2536, 19
  %v2628 = vpop.permute.xlu0 %2627
  %2629 = vrot.lane.b32.xlu0 %v2539, 19
  %v2630 = vpop.permute.xlu0 %2629
  %2631 = vrot.lane.b32.xlu0 %v2542, 19
  %v2632 = vpop.permute.xlu0 %2631
  %2633 = vrot.lane.b32.xlu0 %v2545, 19
  %v2634 = vpop.permute.xlu0 %2633
  %2635 = vrot.lane.b32.xlu0 %v2548, 19
  %v2636 = vpop.permute.xlu0 %2635
  %2637 = vrot.lane.b32.xlu0 %v2551, 19
  %v2638 = vpop.permute.xlu0 %2637
  %2639 = vrot.lane.b32.xlu0 %v2554, 19
  %v2640 = vpop.permute.xlu0 %2639
  %2641 = vrot.lane.b32.xlu0 %v2452, 19
  %v2642 = vpop.permute.xlu0 %2641
  %2643 = vrot.lane.b32.xlu0 %v2465, 19
  %v2644 = vpop.permute.xlu0 %2643
  %2645 = vrot.lane.b32.xlu0 %v2466, 19
  %v2646 = vpop.permute.xlu0 %2645
  %2647 = vrot.lane.b32.xlu0 %v2467, 19
  %v2648 = vpop.permute.xlu0 %2647
  %2649 = vrot.lane.b32.xlu0 %v2468, 19
  %v2650 = vpop.permute.xlu0 %2649
  %2651 = vrot.lane.b32.xlu0 %v2469, 19
  %v2652 = vpop.permute.xlu0 %2651
  %2653 = vrot.lane.b32.xlu0 %v2470, 19
  %v2654 = vpop.permute.xlu0 %2653
  %v2655 = vsel %vm502, %v2586, %v2588
  %v2656 = vsel %vm502, %v2588, %v2590
  %v2657 = vsel %vm502, %v2590, %v2592
  %v2658 = vsel %vm502, %v2592, %v2594
  %v2659 = vsel %vm502, %v2594, %v2596
  %v2660 = vsel %vm502, %v2596, %v2598
  %v2661 = vsel %vm502, %v2600, %v2602
  %v2662 = vsel %vm502, %v2602, %v2604
  %v2663 = vsel %vm502, %v2604, %v2606
  %v2664 = vsel %vm502, %v2606, %v2608
  %v2665 = vsel %vm502, %v2608, %v2610
  %v2666 = vsel %vm502, %v2610, %v2612
  %v2667 = vsel %vm502, %v2614, %v2616
  %v2668 = vsel %vm502, %v2616, %v2618
  %v2669 = vsel %vm502, %v2618, %v2620
  %v2670 = vsel %vm502, %v2620, %v2622
  %v2671 = vsel %vm502, %v2622, %v2624
  %v2672 = vsel %vm502, %v2624, %v2626
  %v2673 = vsel %vm502, %v2628, %v2630
  %v2674 = vsel %vm502, %v2630, %v2632
  %v2675 = vsel %vm502, %v2632, %v2634
  %v2676 = vsel %vm502, %v2634, %v2636
  %v2677 = vsel %vm502, %v2636, %v2638
  %v2678 = vsel %vm502, %v2638, %v2640
  %v2679 = vsel %vm502, %v2642, %v2644
  %v2680 = vsel %vm502, %v2644, %v2646
  %v2681 = vsel %vm502, %v2646, %v2648
  %v2682 = vsel %vm502, %v2648, %v2650
  %v2683 = vsel %vm502, %v2650, %v2652
  %v2684 = vsel %vm502, %v2652, %v2654
  %v2710 = vsel %vm1304, %v2556, 0
  %v2713 = vsel %vm360, %v2679, 0
  %v2716 = vsel %vm360, %v2680, 0
  %v2719 = vsel %vm360, %v2681, 0
  %v2722 = vsel %vm360, %v2682, 0
  %v2725 = vsel %vm360, %v2683, 0
  %v2728 = vsel %vm360, %v2684, 0
  %2730 = vmatprep.subr.bf16.mxu0 %v2656
  %2731 = vmatpush1.bf16.msra.mxu0 %v2655
  %2732 = vmatprep.subr.bf16.mxu0 %v2662
  %2733 = vmatpush1.bf16.msra.mxu0 %v2661
  %2734 = vmatprep.subr.bf16.mxu0 %v2668
  %2735 = vmatpush1.bf16.msra.mxu0 %v2667
  %2736 = vmatprep.subr.bf16.mxu0 %v2674
  %2737 = vmatpush1.bf16.msra.mxu0 %v2673
  %2738 = vmatprep.subr.bf16.mxu0 %v2716
  %2739 = vmatpush1.bf16.msra.mxu0 %v2713
  %2740 = vmatprep.subr.bf16.mxu0 0
  %2741 = vmatpush1.bf16.msra.mxu0 0
  %2742 = vmatprep.subr.bf16.mxu0 0
  %2743 = vmatpush1.bf16.msra.mxu0 0
  %2744 = vmatprep.subr.bf16.mxu0 0
  %2745 = vmatpush1.bf16.msra.mxu0 0
  %2746 = vmatprep.subr.bf16.mxu0 0
  %2747 = vmatpush1.bf16.msra.mxu0 0
  %2748 = vmatprep.subr.bf16.mxu0 0
  %2749 = vmatpush1.bf16.msra.mxu0 0
  %2750 = vmatprep.subr.bf16.mxu0 0
  %2751 = vmatpush1.bf16.msra.mxu0 0
  %2752 = vmatprep.subr.bf16.mxu0 0
  %2753 = vmatpush1.bf16.msra.mxu0 0
  %2754 = vmatprep.subr.bf16.mxu0 0
  %2755 = vmatpush1.bf16.msra.mxu0 0
  %2756 = vmatprep.subr.bf16.mxu0 0
  %2757 = vmatpush1.bf16.msra.mxu0 0
  %2758 = vmatprep.subr.bf16.mxu0 0
  %2759 = vmatpush1.bf16.msra.mxu0 0
  %2760 = vmatprep.subr.bf16.mxu0 0
  %2761 = vmatpush1.bf16.msra.mxu0 0
  %2762 = vmatprep.mubr.bf16.mxu0 0
  %2763 = vmatmul.mubr.bf16.gmra.mrb[0].mxu0 %v2710
  %v2764 = vpop.f32.mrb[0].mxu0
  %v2765 = vadd.f32 0.0, %v2764
  %v2766 = vpop.f32.mrb[0].mxu0
  %v2767 = vadd.f32 0.0, %v2766
  %v2768 = vpop.f32.mrb[0].mxu0
  %v2769 = vpop.f32.mrb[0].mxu0
  %2770 = vdwg.mxu0
  %2771 = vmatprep.subr.bf16.mxu0 %v2658
  %2772 = vmatpush1.bf16.msra.mxu0 %v2657
  %2773 = vmatprep.subr.bf16.mxu0 %v2664
  %2774 = vmatpush1.bf16.msra.mxu0 %v2663
  %2775 = vmatprep.subr.bf16.mxu0 %v2670
  %2776 = vmatpush1.bf16.msra.mxu0 %v2669
  %2777 = vmatprep.subr.bf16.mxu0 %v2676
  %2778 = vmatpush1.bf16.msra.mxu0 %v2675
  %2779 = vmatprep.subr.bf16.mxu0 %v2722
  %2780 = vmatpush1.bf16.msra.mxu0 %v2719
  %2781 = vmatprep.subr.bf16.mxu0 0
  %2782 = vmatpush1.bf16.msra.mxu0 0
  %2783 = vmatprep.subr.bf16.mxu0 0
  %2784 = vmatpush1.bf16.msra.mxu0 0
  %2785 = vmatprep.subr.bf16.mxu0 0
  %2786 = vmatpush1.bf16.msra.mxu0 0
  %2787 = vmatprep.subr.bf16.mxu0 0
  %2788 = vmatpush1.bf16.msra.mxu0 0
  %2789 = vmatprep.subr.bf16.mxu0 0
  %2790 = vmatpush1.bf16.msra.mxu0 0
  %2791 = vmatprep.subr.bf16.mxu0 0
  %2792 = vmatpush1.bf16.msra.mxu0 0
  %2793 = vmatprep.subr.bf16.mxu0 0
  %2794 = vmatpush1.bf16.msra.mxu0 0
  %2795 = vmatprep.subr.bf16.mxu0 0
  %2796 = vmatpush1.bf16.msra.mxu0 0
  %2797 = vmatprep.subr.bf16.mxu0 0
  %2798 = vmatpush1.bf16.msra.mxu0 0
  %2799 = vmatprep.subr.bf16.mxu0 0
  %2800 = vmatpush1.bf16.msra.mxu0 0
  %2801 = vmatprep.subr.bf16.mxu0 0
  %2802 = vmatpush1.bf16.msra.mxu0 0
  %2803 = vmatprep.mubr.bf16.mxu0 0
  %2804 = vmatmul.mubr.bf16.gmra.mrb[0].mxu0 %v2710
  %v2805 = vpop.f32.mrb[0].mxu0
  %v2806 = vadd.f32 0.0, %v2805
  %v2807 = vpop.f32.mrb[0].mxu0
  %v2808 = vadd.f32 0.0, %v2807
  %v2809 = vpop.f32.mrb[0].mxu0
  %v2810 = vpop.f32.mrb[0].mxu0
  %2811 = vdwg.mxu0
  %2812 = vmatprep.subr.bf16.mxu0 %v2660
  %2813 = vmatpush1.bf16.msra.mxu0 %v2659
  %2814 = vmatprep.subr.bf16.mxu0 %v2666
  %2815 = vmatpush1.bf16.msra.mxu0 %v2665
  %2816 = vmatprep.subr.bf16.mxu0 %v2672
  %2817 = vmatpush1.bf16.msra.mxu0 %v2671
  %2818 = vmatprep.subr.bf16.mxu0 %v2678
  %2819 = vmatpush1.bf16.msra.mxu0 %v2677
  %2820 = vmatprep.subr.bf16.mxu0 %v2728
  %2821 = vmatpush1.bf16.msra.mxu0 %v2725
  %2822 = vmatprep.subr.bf16.mxu0 0
  %2823 = vmatpush1.bf16.msra.mxu0 0
  %2824 = vmatprep.subr.bf16.mxu0 0
  %2825 = vmatpush1.bf16.msra.mxu0 0
  %2826 = vmatprep.subr.bf16.mxu0 0
  %2827 = vmatpush1.bf16.msra.mxu0 0
  %2828 = vmatprep.subr.bf16.mxu0 0
  %2829 = vmatpush1.bf16.msra.mxu0 0
  %2830 = vmatprep.subr.bf16.mxu0 0
  %2831 = vmatpush1.bf16.msra.mxu0 0
  %2832 = vmatprep.subr.bf16.mxu0 0
  %2833 = vmatpush1.bf16.msra.mxu0 0
  %2834 = vmatprep.subr.bf16.mxu0 0
  %2835 = vmatpush1.bf16.msra.mxu0 0
  %2836 = vmatprep.subr.bf16.mxu0 0
  %2837 = vmatpush1.bf16.msra.mxu0 0
  %2838 = vmatprep.subr.bf16.mxu0 0
  %2839 = vmatpush1.bf16.msra.mxu0 0
  %2840 = vmatprep.subr.bf16.mxu0 0
  %2841 = vmatpush1.bf16.msra.mxu0 0
  %2842 = vmatprep.subr.bf16.mxu0 0
  %2843 = vmatpush1.bf16.msra.mxu0 0
  %2844 = vmatprep.mubr.bf16.mxu0 0
  %2845 = vmatmul.mubr.bf16.gmra.mrb[0].mxu0 %v2710
  %v2846 = vpop.f32.mrb[0].mxu0
  %v2847 = vadd.f32 0.0, %v2846
  %v2848 = vpop.f32.mrb[0].mxu0
  %v2849 = vadd.f32 0.0, %v2848
  %v2850 = vpop.f32.mrb[0].mxu0
  %v2851 = vpop.f32.mrb[0].mxu0
  %2852 = vdwg.mxu0
  %v2853 = vld [vmem:[%s4] sm:$0xff]
  %v2854 = vmul.f32 %v2765, %v26
  %v2855 = vmul.f32 %v2767, %v30
  %v2856 = vmul.f32 %v2806, %v34
  %v2857 = vmul.f32 %v2808, %v38
  %v2858 = vmul.f32 %v2847, %v42
  %v2859 = vmul.f32 %v2849, %v46
  %v2860 = vadd.f32 %v2854, %v2855
  %v2861 = vadd.f32 %v2860, %v2856
  %v2862 = vadd.f32 %v2861, %v2857
  %v2863 = vadd.f32 %v2862, %v2858
  %v2864 = vadd.f32 %v2863, %v2859
  %2865 = vadd.xlane.f32.xlu0 %v2864
  %v2866 = vpop.xlane.xlu0 %2865
  %v2867 = vmul.f32 %v2866, 0.001953125
  %v2868 = vmul.f32 %v2854, %v2765
  %v2869 = vmul.f32 %v2855, %v2767
  %v2870 = vmul.f32 %v2856, %v2806
  %v2871 = vmul.f32 %v2857, %v2808
  %v2872 = vmul.f32 %v2858, %v2847
  %v2873 = vmul.f32 %v2859, %v2849
  %v2874 = vadd.f32 %v2868, %v2869
  %v2875 = vadd.f32 %v2874, %v2870
  %v2876 = vadd.f32 %v2875, %v2871
  %v2877 = vadd.f32 %v2876, %v2872
  %v2878 = vadd.f32 %v2877, %v2873
  %2879 = vadd.xlane.f32.xlu0 %v2878
  %v2880 = vpop.xlane.xlu0 %2879
  %v2881 = vmul.f32 %v2880, 0.001953125
  %v2882 = vmul.f32 %v2867, %v2867
  %v2883 = vsub.f32 %v2881, %v2882
  %v2884 = vadd.f32 %v2883, 1e-05
  %v2885 = vrsqrt.pop %v2884
  %v2886 = vmul.f32 %v2853, %v2885
  %2888 = vset.pattern.permute.xlu0 6
  %2889 = vperm.xlu0 %2888, %v2886
  %v2890 = vpop.permute.xlu0 %2889
  %v2892 = vmul.f32 %v2765, %v2890
  %v2893 = vmul.f32 %v2767, %v2890
  %v2894 = vmul.f32 %v2806, %v2890
  %v2895 = vmul.f32 %v2808, %v2890
  %v2896 = vmul.f32 %v2847, %v2890
  %v2897 = vmul.f32 %v2849, %v2890
  %v2898 = vmul.f32 %v2867, %v2886
  %2900 = vrot.lane.b32.xlu0 %v2898, 1
  %v2901 = vpop.permute.xlu0 %2900
  %v2903 = vsub.f32 %v2853, %v2901
  %2905 = vset.pattern.permute.xlu0 7
  %2906 = vperm.xlu0 %2905, %v2903
  %v2907 = vpop.permute.xlu0 %2906
  %v2909 = vadd.f32 %v2892, %v2907
  %v2910 = vadd.f32 %v2893, %v2907
  %v2911 = vadd.f32 %v2894, %v2907
  %v2912 = vadd.f32 %v2895, %v2907
  %v2913 = vadd.f32 %v2896, %v2907
  %v2914 = vadd.f32 %v2897, %v2907
  %v2915 = vadd.f32 %v2909, %v740
  %v2916 = vadd.f32 %v2910, %v741
  %v2917 = vadd.f32 %v2911, %v742
  %v2918 = vadd.f32 %v2912, %v743
  %v2919 = vadd.f32 %v2913, %v744
  %v2920 = vadd.f32 %v2914, %v745
  %v2921 = vmax.f32 %v2915, 0.0
  %v2922 = vmax.f32 %v2916, 0.0
  %v2923 = vmax.f32 %v2917, 0.0
  %v2924 = vmax.f32 %v2918, 0.0
  %v2925 = vmax.f32 %v2919, 0.0
  %v2926 = vmax.f32 %v2920, 0.0
  %2927 = vst [vmem:[%s5] sm:$0xff] %v2921
  %2928 = vst [vmem:[%s5 + $0x8] sm:$0xff] %v2922
  %2929 = vst [vmem:[%s5 + $0x10] sm:$0xff] %v2923
  %2930 = vst [vmem:[%s5 + $0x18] sm:$0xff] %v2924
  %2931 = vst [vmem:[%s5 + $0x20] sm:$0xff] %v2925
  %2932 = vst [vmem:[%s5 + $0x28] sm:$0xff] %v2926
  // Predicated region
  $region22: #{quadruple_conv_forward.1} parent=0 // pred_check
    _
  $region23: #{quadruple_conv_forward.1} parent=0 // pred_check_branch
    %2934 = sbr.rel (0) target = $region25
  $region24: #{quadruple_conv_forward.1} parent=0 // pred_region
    _
  $region25: #{quadruple_conv_forward.1} parent=0 // pred_fallthru
    _
  // Predicated region
  $region26: #{quadruple_conv_forward.1} parent=0 // pred_check
    _
  $region27: #{quadruple_conv_forward.1} parent=0 // pred_check_branch
    %2936 = sbr.rel (0) target = $region29
  $region28: #{quadruple_conv_forward.1} parent=0 // pred_region
    _
  $region29: #{quadruple_conv_forward.1} parent=0 // pred_fallthru
    _

</llo_original>
